<compile_context>
chip_gen: v5e
topology: v5e:2x2
jax: 0.10.0
libtpu: 0.0.40
codegen_flags: <defaults>
</compile_context>

<pallas_src>
import jax
import jax.numpy as jnp
from jax import lax
from jax.experimental import pallas as pl
from jax.experimental.pallas import tpu as pltpu


LANE = 128


def _round_up(n, m):
    return ((n + m - 1) // m) * m


# ----------------------------- kernel ---------------------------------------


def fused_stem_gap_linear_kernel(x_ref, wconv_ref, wlin_ref, blin_ref, out_ref):
    """Fused stem(conv3x3 + folded BN) -> global-average-pool -> Linear, per batch tile.

    x_ref     : (TB, H+2, W+2, Cin)  padded NHWC input tile, bf16
    wconv_ref : (9*Cin, Cpad)        conv weight with BN scale folded, bf16, lane-padded
    wlin_ref  : (Cpad, Npad)         classifier weight with 1/(H*W) folded in, bf16
    blin_ref  : (1, Npad)            classifier bias + folded BN shift, f32
    out_ref   : (TB, 1, Npad)        logits (lane-dense; sliced in the wrapper)
    """
    tb, hp, wp, cin = x_ref.shape
    h, w = hp - 2, wp - 2
    hw = h * w
    cpad = wconv_ref.shape[1]

    # Load the padded tile once; do the layout massaging in f32 (32-bit sublane
    # slicing is the well-trodden path; cast to bf16 right before the MXU).
    x = x_ref[...].astype(jnp.float32)                      # (tb, H+2, W+2, Cin)

    # In-kernel im2col: 9 statically shifted taps, concatenated on the lane axis.
    # Tap/channel ordering (ky, kx, ci) matches the (3,3,Cin,Cstem) weight reshape.
    taps = [
        x[:, dy:dy + h, dx:dx + w, :].reshape(tb * hw, cin)
        for dy in range(3) for dx in range(3)
    ]
    patches = jnp.concatenate(taps, axis=-1).astype(jnp.bfloat16)   # (tb*H*W, 9*Cin)

    # Stem conv as one MXU matmul, f32 accumulate. BN shift is folded into blin.
    feat = jnp.dot(patches, wconv_ref[...],
                   preferred_element_type=jnp.float32)       # (tb*H*W, Cpad) f32

    # Global average pool: per-batch sum over H*W (1/(H*W) is folded into wlin).
    pooled = jnp.sum(feat.reshape(tb, hw, cpad), axis=1)     # (tb, Cpad) f32

    logits = jnp.dot(pooled.astype(jnp.bfloat16), wlin_ref[...],
                     preferred_element_type=jnp.float32) + blin_ref[...]
    out_ref[:, 0, :] = logits.astype(out_ref.dtype)


# ----------------------------- wrapper ---------------------------------------


def net_forward(x_nchw, params, n_classes, tile_batch=1):
    """Forward pass. x_nchw: (B, Cin, H, W) float32 -> logits (B, n_classes)."""
    wconv = params["wconv"]        # (9*Cin, Cpad)  bf16
    wlin = params["wlin"]          # (Cpad, Npad)   bf16
    blin = params["blin"]          # (1, Npad)      f32

    B, Cin, H, W = x_nchw.shape
    K, Cpad = wconv.shape
    Npad = wlin.shape[1]
    Hp, Wp = H + 2, W + 2

    tb = min(tile_batch, B)
    assert B % tb == 0, (B, tb)

    # Layout glue stays in XLA: NCHW -> NHWC, zero-pad spatially, cast to bf16.
    # (No 9x im2col duplication in HBM any more.)
    x = jnp.transpose(x_nchw, (0, 2, 3, 1))
    xpad = jnp.pad(x, ((0, 0), (1, 1), (1, 1), (0, 0))).astype(jnp.bfloat16)

    cost = pl.CostEstimate(
        flops=2 * B * H * W * K * Cpad + 2 * B * Cpad * Npad,
        transcendentals=0,
        bytes_accessed=(B * Hp * Wp * Cin * 2
                        + K * Cpad * 2 + Cpad * Npad * 2 + Npad * 4
                        + B * Npad * 4),
    )

    out = pl.pallas_call(
        fused_stem_gap_linear_kernel,
        out_shape=jax.ShapeDtypeStruct((B, 1, Npad), jnp.float32),
        grid_spec=pltpu.PrefetchScalarGridSpec(
            num_scalar_prefetch=0,
            grid=(B // tb,),
            in_specs=[
                # Per-step batch tile of the padded input (last two dims = full dims).
                pl.BlockSpec((tb, Hp, Wp, Cin), lambda i: (i, 0, 0, 0)),
                # Weights: constant index_maps -> stay resident across grid steps.
                pl.BlockSpec((K, Cpad), lambda i: (0, 0)),
                pl.BlockSpec((Cpad, Npad), lambda i: (0, 0)),
                pl.BlockSpec((1, Npad), lambda i: (0, 0)),
            ],
            out_specs=pl.BlockSpec((tb, 1, Npad), lambda i: (i, 0, 0)),
        ),
        compiler_params=pltpu.CompilerParams(
            dimension_semantics=("parallel",)),
        cost_estimate=cost,
    )(xpad, wconv, wlin, blin)

    return out.reshape(B, Npad)[:, :n_classes]


# ----------------------------- parameters ------------------------------------


def init_raw_params(key, in_channels, channels, n_classes, stem_multiplier=3):
    """Deterministic synthetic parameters matching Net.__init__ shapes (eval-mode BN)."""
    c_stem = stem_multiplier * channels
    k_conv, k_g, k_b, k_lw, k_lb = jax.random.split(key, 5)

    conv_w_oihw = 0.1 * jax.random.normal(
        k_conv, (c_stem, in_channels, 3, 3), jnp.float32)
    bn_gamma = 1.0 + 0.05 * jax.random.normal(k_g, (c_stem,), jnp.float32)
    bn_beta = 0.05 * jax.random.normal(k_b, (c_stem,), jnp.float32)
    bn_mean = jnp.zeros((c_stem,), jnp.float32)
    bn_var = jnp.ones((c_stem,), jnp.float32)
    linear_w = 0.1 * jax.random.normal(k_lw, (c_stem, n_classes), jnp.float32)
    linear_b = 0.05 * jax.random.normal(k_lb, (n_classes,), jnp.float32)

    return {
        "conv_w_oihw": conv_w_oihw,
        "bn_gamma": bn_gamma, "bn_beta": bn_beta,
        "bn_mean": bn_mean, "bn_var": bn_var,
        "linear_w": linear_w, "linear_b": linear_b,
    }


def prepare_kernel_params(raw, H, W, eps=1e-5):
    """Fold BN scale into conv weight, BN shift into the classifier bias, 1/(H*W)
    into the classifier weight; cast MXU operands to bf16 and pad lanes to 128."""
    c_stem, cin = raw["conv_w_oihw"].shape[0], raw["conv_w_oihw"].shape[1]
    n_classes = raw["linear_w"].shape[1]

    scale = raw["bn_gamma"] / jnp.sqrt(raw["bn_var"] + eps)        # (Cstem,)
    shift = raw["bn_beta"] - raw["bn_mean"] * scale                # (Cstem,)

    w_hwio = jnp.transpose(raw["conv_w_oihw"], (2, 3, 1, 0))       # (3,3,Cin,Cstem)
    w_folded = (w_hwio * scale).reshape(9 * cin, c_stem)           # BN scale folded

    wlin = raw["linear_w"] / float(H * W)                          # GAP mean folded
    # BN shift commutes with the (linear) GAP: shift @ linear_w goes into the bias.
    blin = raw["linear_b"] + shift @ raw["linear_w"]

    cpad = _round_up(c_stem, LANE)
    npad = _round_up(n_classes, LANE)

    return {
        "wconv": jnp.pad(w_folded, ((0, 0), (0, cpad - c_stem))).astype(jnp.bfloat16),
        "wlin": jnp.pad(wlin, ((0, cpad - c_stem),
                               (0, npad - n_classes))).astype(jnp.bfloat16),
        "blin": jnp.pad(blin, ((0, npad - n_classes),)).reshape(1, npad)
                   .astype(jnp.float32),
    }


# ----------------------------- reference (sanity) -----------------------------


def reference_forward(x_nchw, raw, eps=1e-5):
    x = jnp.transpose(x_nchw, (0, 2, 3, 1)).astype(jnp.float32)
    w_hwio = jnp.transpose(raw["conv_w_oihw"], (2, 3, 1, 0))
    y = lax.conv_general_dilated(
        x, w_hwio, window_strides=(1, 1), padding="SAME",
        dimension_numbers=("NHWC", "HWIO", "NHWC"))
    scale = raw["bn_gamma"] / jnp.sqrt(raw["bn_var"] + eps)
    shift = raw["bn_beta"] - raw["bn_mean"] * scale
    y = y * scale + shift
    pooled = jnp.mean(y, axis=(1, 2))
    return pooled @ raw["linear_w"] + raw["linear_b"]


if __name__ == "__main__":
    # Shapes consistent with the module:
    # input_size=16, in_channels=4, channels=8 (-> stem channels 24), n_classes=10.
    B, Cin, H, W = 2, 4, 16, 16
    channels, n_classes = 8, 10

    key = jax.random.PRNGKey(0)
    k_x, k_p = jax.random.split(key)
    x = jax.random.normal(k_x, (B, Cin, H, W), jnp.float32)

    raw = init_raw_params(k_p, Cin, channels, n_classes)
    params = prepare_kernel_params(raw, H, W)

    logits = net_forward(x, params, n_classes, tile_batch=1)
    jax.block_until_ready(logits)

    assert logits.shape == (B, n_classes), logits.shape
    assert bool(jnp.all(jnp.isfinite(logits)))

    ref = reference_forward(x, raw)
    # bf16 MXU operands with f32 accumulation -> tolerance loosened accordingly.
    assert jnp.allclose(logits, ref, atol=2e-2, rtol=2e-2), \
        float(jnp.max(jnp.abs(logits - ref)))

    print("KERNEL_OK")
</pallas_src>

<mosaic_0001>
module attributes {stable_mosaic.version = 11 : i64} {
  func.func @fused_stem_gap_linear_kernel(%arg0: i32, %arg1: memref<1x18x18x4xbf16, #tpu.memory_space<vmem>>, %arg2: memref<36x128xbf16, #tpu.memory_space<vmem>>, %arg3: memref<128x128xbf16, #tpu.memory_space<vmem>>, %arg4: memref<1x128xf32, #tpu.memory_space<vmem>>, %arg5: memref<1x1x128xf32, #tpu.memory_space<vmem>>) attributes {dimension_semantics = [#tpu.dimension_semantics<parallel>], iteration_bounds = array<i64: 2>, scalar_prefetch = 0 : i64, scratch_operands = 0 : i64, tpu.core_type = #tpu.core_type<tc>, window_params = [{transform_indices = @transform_0, window_bounds = array<i64: 1, 18, 18, 4>}, {pipeline_mode = #tpu.pipeline_mode<synchronous>, transform_indices = @transform_1, window_bounds = array<i64: 36, 128>}, {pipeline_mode = #tpu.pipeline_mode<synchronous>, transform_indices = @transform_2, window_bounds = array<i64: 128, 128>}, {pipeline_mode = #tpu.pipeline_mode<synchronous>, transform_indices = @transform_3, window_bounds = array<i64: 1, 128>}, {transform_indices = @transform_4, window_bounds = array<i64: 1, 1, 128>}]} {
    %c0 = arith.constant 0 : index
    %c0_0 = arith.constant 0 : index
    %c0_1 = arith.constant 0 : index
    %c0_2 = arith.constant 0 : index
    %0 = vector.load %arg1[%c0, %c0_0, %c0_1, %c0_2] : memref<1x18x18x4xbf16, #tpu.memory_space<vmem>>, vector<1x18x18x4xbf16>
    %1 = arith.extf %0 : vector<1x18x18x4xbf16> to vector<1x18x18x4xf32>
    %2 = vector.extract_strided_slice %1 {offsets = [0, 0, 0, 0], sizes = [1, 16, 16, 4], strides = [1, 1, 1, 1]} : vector<1x18x18x4xf32> to vector<1x16x16x4xf32>
    %3 = vector.shape_cast %2 : vector<1x16x16x4xf32> to vector<256x4xf32>
    %4 = vector.extract_strided_slice %1 {offsets = [0, 0, 1, 0], sizes = [1, 16, 16, 4], strides = [1, 1, 1, 1]} : vector<1x18x18x4xf32> to vector<1x16x16x4xf32>
    %5 = vector.shape_cast %4 : vector<1x16x16x4xf32> to vector<256x4xf32>
    %6 = vector.extract_strided_slice %1 {offsets = [0, 0, 2, 0], sizes = [1, 16, 16, 4], strides = [1, 1, 1, 1]} : vector<1x18x18x4xf32> to vector<1x16x16x4xf32>
    %7 = vector.shape_cast %6 : vector<1x16x16x4xf32> to vector<256x4xf32>
    %8 = vector.extract_strided_slice %1 {offsets = [0, 1, 0, 0], sizes = [1, 16, 16, 4], strides = [1, 1, 1, 1]} : vector<1x18x18x4xf32> to vector<1x16x16x4xf32>
    %9 = vector.shape_cast %8 : vector<1x16x16x4xf32> to vector<256x4xf32>
    %10 = vector.extract_strided_slice %1 {offsets = [0, 1, 1, 0], sizes = [1, 16, 16, 4], strides = [1, 1, 1, 1]} : vector<1x18x18x4xf32> to vector<1x16x16x4xf32>
    %11 = vector.shape_cast %10 : vector<1x16x16x4xf32> to vector<256x4xf32>
    %12 = vector.extract_strided_slice %1 {offsets = [0, 1, 2, 0], sizes = [1, 16, 16, 4], strides = [1, 1, 1, 1]} : vector<1x18x18x4xf32> to vector<1x16x16x4xf32>
    %13 = vector.shape_cast %12 : vector<1x16x16x4xf32> to vector<256x4xf32>
    %14 = vector.extract_strided_slice %1 {offsets = [0, 2, 0, 0], sizes = [1, 16, 16, 4], strides = [1, 1, 1, 1]} : vector<1x18x18x4xf32> to vector<1x16x16x4xf32>
    %15 = vector.shape_cast %14 : vector<1x16x16x4xf32> to vector<256x4xf32>
    %16 = vector.extract_strided_slice %1 {offsets = [0, 2, 1, 0], sizes = [1, 16, 16, 4], strides = [1, 1, 1, 1]} : vector<1x18x18x4xf32> to vector<1x16x16x4xf32>
    %17 = vector.shape_cast %16 : vector<1x16x16x4xf32> to vector<256x4xf32>
    %18 = vector.extract_strided_slice %1 {offsets = [0, 2, 2, 0], sizes = [1, 16, 16, 4], strides = [1, 1, 1, 1]} : vector<1x18x18x4xf32> to vector<1x16x16x4xf32>
    %19 = vector.shape_cast %18 : vector<1x16x16x4xf32> to vector<256x4xf32>
    %20 = tpu.concatenate %3, %5, %7, %9, %11, %13, %15, %17, %19 in 1 : vector<256x4xf32>, vector<256x4xf32>, vector<256x4xf32>, vector<256x4xf32>, vector<256x4xf32>, vector<256x4xf32>, vector<256x4xf32>, vector<256x4xf32>, vector<256x4xf32> -> vector<256x36xf32>
    %21 = arith.truncf %20 : vector<256x36xf32> to vector<256x36xbf16>
    %c0_3 = arith.constant 0 : index
    %c0_4 = arith.constant 0 : index
    %22 = vector.load %arg2[%c0_3, %c0_4] : memref<36x128xbf16, #tpu.memory_space<vmem>>, vector<36x128xbf16>
    %cst = arith.constant dense<0.000000e+00> : vector<256x128xf32>
    %23 = tpu.matmul %21, %22, %cst {dimension_numbers = #tpu.dot_dimension_numbers<[1], [0], [0], [1], [0, 0, 1, 1], [], []>} : vector<256x36xbf16>, vector<36x128xbf16>, vector<256x128xf32> -> vector<256x128xf32>
    %24 = vector.shape_cast %23 : vector<256x128xf32> to vector<1x256x128xf32>
    %cst_5 = arith.constant dense<0.000000e+00> : vector<1x128xf32>
    %25 = vector.multi_reduction <add>, %24, %cst_5 [1] : vector<1x256x128xf32> to vector<1x128xf32>
    %26 = arith.truncf %25 : vector<1x128xf32> to vector<1x128xbf16>
    %c0_6 = arith.constant 0 : index
    %c0_7 = arith.constant 0 : index
    %27 = vector.load %arg3[%c0_6, %c0_7] : memref<128x128xbf16, #tpu.memory_space<vmem>>, vector<128x128xbf16>
    %cst_8 = arith.constant dense<0.000000e+00> : vector<1x128xf32>
    %28 = tpu.matmul %26, %27, %cst_8 {dimension_numbers = #tpu.dot_dimension_numbers<[1], [0], [0], [1], [0, 0, 1, 1], [], []>} : vector<1x128xbf16>, vector<128x128xbf16>, vector<1x128xf32> -> vector<1x128xf32>
    %c0_9 = arith.constant 0 : index
    %c0_10 = arith.constant 0 : index
    %29 = vector.load %arg4[%c0_9, %c0_10] : memref<1x128xf32, #tpu.memory_space<vmem>>, vector<1x128xf32>
    %30 = arith.addf %28, %29 : vector<1x128xf32>
    %c0_11 = arith.constant 0 : index
    %c0_12 = arith.constant 0 : index
    %c0_13 = arith.constant 0 : index
    %31 = vector.load %arg5[%c0_11, %c0_12, %c0_13] : memref<1x1x128xf32, #tpu.memory_space<vmem>>, vector<1x1x128xf32>
    %32 = vector.shape_cast %31 : vector<1x1x128xf32> to vector<1x128xf32>
    %33 = vector.shape_cast %30 : vector<1x128xf32> to vector<1x1x128xf32>
    tpu.vector_store %arg5[%c0_11, %c0_12, %c0_13], %33 {strides = array<i32>} : memref<1x1x128xf32, #tpu.memory_space<vmem>>, vector<1x1x128xf32>,
    return
  }
  func.func @transform_0(%arg0: i32) -> (i32, i32, i32, i32) {
    %c0_i32 = arith.constant 0 : i32
    %c0_i32_0 = arith.constant 0 : i32
    %c0_i32_1 = arith.constant 0 : i32
    %c0_i32_2 = arith.constant 0 : i32
    return %arg0, %c0_i32, %c0_i32_0, %c0_i32_1 : i32, i32, i32, i32
  }
  func.func @transform_1(%arg0: i32) -> (i32, i32) {
    %c0_i32 = arith.constant 0 : i32
    %c0_i32_0 = arith.constant 0 : i32
    %c0_i32_1 = arith.constant 0 : i32
    return %c0_i32, %c0_i32_0 : i32, i32
  }
  func.func @transform_2(%arg0: i32) -> (i32, i32) {
    %c0_i32 = arith.constant 0 : i32
    %c0_i32_0 = arith.constant 0 : i32
    %c0_i32_1 = arith.constant 0 : i32
    return %c0_i32, %c0_i32_0 : i32, i32
  }
  func.func @transform_3(%arg0: i32) -> (i32, i32) {
    %c0_i32 = arith.constant 0 : i32
    %c0_i32_0 = arith.constant 0 : i32
    %c0_i32_1 = arith.constant 0 : i32
    return %c0_i32, %c0_i32_0 : i32, i32
  }
  func.func @transform_4(%arg0: i32) -> (i32, i32, i32) {
    %c0_i32 = arith.constant 0 : i32
    %c0_i32_0 = arith.constant 0 : i32
    %c0_i32_1 = arith.constant 0 : i32
    return %arg0, %c0_i32, %c0_i32_0 : i32, i32, i32
  }
}

</mosaic_0001>

<llo_original>
// kernel: tpu_custom_call.1
$region0: #{tpu_custom_call.1}
  #allocation0 [shape = 'u32[]', space=smem, size = 0x4, offset = 0x4, fixed_abs, tag = 'smem constant byte address 0x4 - core index']
  #allocation1 [shape = 'u32[72,128]{1,0:T(1,128)}', space=vmem, size = 0x9000, scoped, tag = 'internal scratch']
  %s0 = inlined_call_operand.vmem [shape: bf16[2,18,18,4], index: 0, kind: input, shape index: {}]
  %s1 = inlined_call_operand.vmem [shape: bf16[36,128], index: 1, kind: input, shape index: {}]
  %s2 = inlined_call_operand.vmem [shape: bf16[128,128], index: 2, kind: input, shape index: {}]
  %s3 = inlined_call_operand.vmem [shape: f32[1,128], index: 3, kind: input, shape index: {}]
  %s4 = inlined_call_operand.hbm [shape: f32[2,1,128], index: 4, kind: output, shape index: {}]
  %s5 = sld [smem:[#allocation0]]
  $region49: #{tpu_custom_call.1} parent=0
    _
  %s7 = ssub.s32 1, %s5
  %s8 = scalar_select 0, %s7, %s5
  $region1: #{tpu_custom_call.1} parent=0
    #allocation2 [shape = 'u8[1024]{0}', space=vmem, size = 0x400, scoped, tag = 'output window, operand 0']
    #allocation3 [shape = 's32[2]{0}', space=sflag, size = 0x8, scoped, tag = 'scoped memory for tpu_custom_call.1']
    %9 = vsyncpa [#allocation3], 0
    %s10 = scalar_lea.sflag [#allocation3], 1
    %11 = vsyncpa %s10, 0
    loop: start=0, step=1, limit=4
    $region2: #{tpu_custom_call.1} parent=1 // loop_pre_header
      _
    $region3: #{tpu_custom_call.1} parent=1 // loop_header
      %s13 = sphi 0, %s17
      %p14 = scmp.ge.s32.totalorder %s13, 4
      %s23 = sphi 0, %s25
      %s26 = sphi 0, %s23
      %s27 = sphi 0, %s26
      %s43 = sphi 0, %s27
      %s47 = sphi 0, %s47
      %s49 = sphi 0, %s47
      %s50 = sphi 0, %s49
      %s64 = sphi 0, %s50
      %s68 = sphi 0, %s68
      %s70 = sphi 0, %s68
      %s71 = sphi 0, %s70
      %s85 = sphi 0, %s71
      %s89 = sphi 0, %s89
      %s91 = sphi 0, %s89
      %s92 = sphi 0, %s91
      %s106 = sphi 0, %s92
      %s112 = sphi 0, %s114
      %s115 = sphi 0, %s112
      %s116 = sphi 0, %s115
      %s132 = sphi 0, %s116
    $region4: #{tpu_custom_call.1} parent=1 // loop_header_branch
      %16 = sbr.rel (%p14) target = $region8
    $region5: #{tpu_custom_call.1} parent=1 // loop_body
      %s18 = ssub.s32 %s13, 1
      %s19 = ssub.s32 %s13, 2
      %s20 = sadd.s32 %s13, 1
      %s21 = ssub.s32 %s13, %s20
      %p22 = scmp.eq.s32.totalorder %s21, 0
      %s24 = sadd.s32 %s23, 1
      %s25 = scalar_select %p22, %s23, %s24
      %p28 = pneg %p22
      %p29 = scmp.eq.s32.totalorder %s13, 1
      %p30 = por %p28, %p29
      %p31 = scmp.ne.s32.totalorder %s23, %s26
      %p32 = scmp.eq.s32.totalorder %s13, 0
      %p33 = por %p31, %p32
      %p34 = scmp.ne.s32.totalorder %s23, %s26
      %p35 = scmp.eq.s32.totalorder %s18, 1
      %p36 = por %p34, %p35
      %p37 = scmp.ne.s32.totalorder %s26, %s27
      %p38 = scmp.eq.s32.totalorder %s18, 0
      %p39 = por %p37, %p38
      %p40 = scmp.ne.s32.totalorder %s26, %s27
      %p41 = scmp.eq.s32.totalorder %s19, 1
      %p42 = por %p40, %p41
      %p44 = scmp.ne.s32.totalorder %s27, %s43
      %p45 = scmp.eq.s32.totalorder %s19, 0
      %p46 = por %p44, %p45
      %s48 = sadd.s32 %s47, 1
      %p51 = scmp.eq.s32.totalorder %s13, 1
      %p52 = scmp.ne.s32.totalorder %s47, %s49
      %p53 = scmp.eq.s32.totalorder %s13, 0
      %p54 = por %p52, %p53
      %p55 = scmp.ne.s32.totalorder %s47, %s49
      %p56 = scmp.eq.s32.totalorder %s18, 1
      %p57 = por %p55, %p56
      %p58 = scmp.ne.s32.totalorder %s49, %s50
      %p59 = scmp.eq.s32.totalorder %s18, 0
      %p60 = por %p58, %p59
      %p61 = scmp.ne.s32.totalorder %s49, %s50
      %p62 = scmp.eq.s32.totalorder %s19, 1
      %p63 = por %p61, %p62
      %p65 = scmp.ne.s32.totalorder %s50, %s64
      %p66 = scmp.eq.s32.totalorder %s19, 0
      %p67 = por %p65, %p66
      %s69 = sadd.s32 %s68, 1
      %p72 = scmp.eq.s32.totalorder %s13, 1
      %p73 = scmp.ne.s32.totalorder %s68, %s70
      %p74 = scmp.eq.s32.totalorder %s13, 0
      %p75 = por %p73, %p74
      %p76 = scmp.ne.s32.totalorder %s68, %s70
      %p77 = scmp.eq.s32.totalorder %s18, 1
      %p78 = por %p76, %p77
      %p79 = scmp.ne.s32.totalorder %s70, %s71
      %p80 = scmp.eq.s32.totalorder %s18, 0
      %p81 = por %p79, %p80
      %p82 = scmp.ne.s32.totalorder %s70, %s71
      %p83 = scmp.eq.s32.totalorder %s19, 1
      %p84 = por %p82, %p83
      %p86 = scmp.ne.s32.totalorder %s71, %s85
      %p87 = scmp.eq.s32.totalorder %s19, 0
      %p88 = por %p86, %p87
      %s90 = sadd.s32 %s89, 1
      %p93 = scmp.eq.s32.totalorder %s13, 1
      %p94 = scmp.ne.s32.totalorder %s89, %s91
      %p95 = scmp.eq.s32.totalorder %s13, 0
      %p96 = por %p94, %p95
      %p97 = scmp.ne.s32.totalorder %s89, %s91
      %p98 = scmp.eq.s32.totalorder %s18, 1
      %p99 = por %p97, %p98
      %p100 = scmp.ne.s32.totalorder %s91, %s92
      %p101 = scmp.eq.s32.totalorder %s18, 0
      %p102 = por %p100, %p101
      %p103 = scmp.ne.s32.totalorder %s91, %s92
      %p104 = scmp.eq.s32.totalorder %s19, 1
      %p105 = por %p103, %p104
      %p107 = scmp.ne.s32.totalorder %s92, %s106
      %p108 = scmp.eq.s32.totalorder %s19, 0
      %p109 = por %p107, %p108
      %s110 = ssub.s32 %s13, %s20
      %p111 = scmp.eq.s32.totalorder %s110, 0
      %s113 = sadd.s32 %s112, 1
      %s114 = scalar_select %p111, %s112, %s113
      %p117 = pneg %p111
      %p118 = scmp.eq.s32.totalorder %s13, 1
      %p119 = por %p117, %p118
      %p120 = scmp.ne.s32.totalorder %s112, %s115
      %p121 = scmp.eq.s32.totalorder %s13, 0
      %p122 = por %p120, %p121
      %p123 = scmp.ne.s32.totalorder %s112, %s115
      %p124 = scmp.eq.s32.totalorder %s18, 1
      %p125 = por %p123, %p124
      %p126 = scmp.ne.s32.totalorder %s115, %s116
      %p127 = scmp.eq.s32.totalorder %s18, 0
      %p128 = por %p126, %p127
      %p129 = scmp.ne.s32.totalorder %s115, %s116
      %p130 = scmp.eq.s32.totalorder %s19, 1
      %p131 = por %p129, %p130
      %p133 = scmp.ne.s32.totalorder %s116, %s132
      %p134 = scmp.eq.s32.totalorder %s19, 0
      %p135 = por %p133, %p134
      %p136 = scmp.le.s32.totalorder 1, %s13
      %p137 = scmp.lt.s32.totalorder %s13, 3
      %p138 = pnand %p136, %p137
      %p139 = pneg %p138
      // Predicated region
      $region9: #{tpu_custom_call.1} parent=5 // pred_check
        _
      $region10: #{tpu_custom_call.1} parent=5 // pred_check_branch
        %141 = sbr.rel (%p138) target = $region12
      $region11: #{tpu_custom_call.1} parent=5 // pred_region
        %s142 = ssub.s32 %s13, 1
        // Predicated region
        $region13: #{tpu_custom_call.1} parent=11 // pred_check
          %p143 = pneg %p60
        $region14: #{tpu_custom_call.1} parent=11 // pred_check_branch
          %145 = sbr.rel (%p143) target = $region16
        $region15: #{tpu_custom_call.1} parent=11 // pred_region
          _
        $region16: #{tpu_custom_call.1} parent=11 // pred_fallthru
          _
        // Predicated region
        $region17: #{tpu_custom_call.1} parent=11 // pred_check
          %p146 = pneg %p81
        $region18: #{tpu_custom_call.1} parent=11 // pred_check_branch
          %148 = sbr.rel (%p146) target = $region20
        $region19: #{tpu_custom_call.1} parent=11 // pred_region
          _
        $region20: #{tpu_custom_call.1} parent=11 // pred_fallthru
          _
        // Predicated region
        $region21: #{tpu_custom_call.1} parent=11 // pred_check
          %p149 = pneg %p102
        $region22: #{tpu_custom_call.1} parent=11 // pred_check_branch
          %151 = sbr.rel (%p149) target = $region24
        $region23: #{tpu_custom_call.1} parent=11 // pred_region
          _
        $region24: #{tpu_custom_call.1} parent=11 // pred_fallthru
          _
      $region12: #{tpu_custom_call.1} parent=5 // pred_fallthru
        _
      %p152 = scmp.lt.s32.totalorder %s13, 2
      // Predicated region
      $region25: #{tpu_custom_call.1} parent=5 // pred_check
        %p153 = pneg %p152
      $region26: #{tpu_custom_call.1} parent=5 // pred_check_branch
        %155 = sbr.rel (%p153) target = $region28
      $region27: #{tpu_custom_call.1} parent=5 // pred_region
        // Predicated region
        $region29: #{tpu_custom_call.1} parent=27 // pred_check
          %p156 = pneg %p33
        $region30: #{tpu_custom_call.1} parent=27 // pred_check_branch
          %158 = sbr.rel (%p156) target = $region32
        $region31: #{tpu_custom_call.1} parent=27 // pred_region
          %p159 = scmp.lt.s32.totalorder %s13, 1
          %s160 = scalar_select %p159, %s13, 1
          %s161 = smul.addr %s160, 54
          %s162 = smul.addr %s161, 4
          %s163 = scalar_lea.vmem %s0, %s162
        $region32: #{tpu_custom_call.1} parent=27 // pred_fallthru
          _
      $region28: #{tpu_custom_call.1} parent=5 // pred_fallthru
        _
      %p164 = scmp.le.s32.totalorder 1, %s13
      %p165 = scmp.lt.s32.totalorder %s13, 3
      %p166 = pnand %p164, %p165
      %p167 = pneg %p166
      // Predicated region
      $region33: #{tpu_custom_call.1} parent=5 // pred_check
        _
      $region34: #{tpu_custom_call.1} parent=5 // pred_check_branch
        %169 = sbr.rel (%p166) target = $region36
      $region35: #{tpu_custom_call.1} parent=5 // pred_region
        %s170 = ssub.s32 %s13, 1
        %p171 = scmp.lt.s32.totalorder %s18, 1
        %s172 = scalar_select %p171, %s18, 1
        %s173 = smul.addr %s172, 54
        %s174 = smul.addr %s173, 4
        %s175 = scalar_lea.vmem %s0, %s174
        %p176 = pneg %p39
        %p177 = pneg %p36
        %p178 = pneg %p60
        %p179 = pneg %p57
        %p180 = pneg %p81
        %p181 = pneg %p78
        %p182 = pneg %p102
        %p183 = pneg %p99
        %p184 = pneg %p128
        %p185 = pneg %p125
        %s186 = sand.u32 %s115, 1
        %s187 = scalar_lea.sflag [#allocation3], %s186
        %s188 = sand.u32 %s115, 1
        %s189 = scalar_lea.vmem [#allocation2], %s188
        %p190 = scmp.lt.s32.totalorder %s18, 1
        %s191 = scalar_select %p190, %s18, 1
        %s192 = smul.addr %s191, 54
        %s193 = smul.addr %s192, 4
        %s194 = scalar_lea.vmem %s0, %s193
        %v196 = vld [vmem:[%s194] sm:$0xf]
        %v197 = vld [vmem:[%s194 + $0x4] sm:$0xf]
        %v198 = vld [vmem:[%s194 + $0x8] sm:$0x1]
        %v199 = vld [vmem:[%s194 + $0xc] sm:$0xf]
        %v200 = vld [vmem:[%s194 + $0x10] sm:$0xf]
        %v201 = vld [vmem:[%s194 + $0x14] sm:$0x1]
        %v202 = vld [vmem:[%s194 + $0x18] sm:$0xf]
        %v203 = vld [vmem:[%s194 + $0x1c] sm:$0xf]
        %v204 = vld [vmem:[%s194 + $0x20] sm:$0x1]
        %v205 = vld [vmem:[%s194 + $0x24] sm:$0xf]
        %v206 = vld [vmem:[%s194 + $0x28] sm:$0xf]
        %v207 = vld [vmem:[%s194 + $0x2c] sm:$0x1]
        %v208 = vld [vmem:[%s194 + $0x30] sm:$0xf]
        %v209 = vld [vmem:[%s194 + $0x34] sm:$0xf]
        %v210 = vld [vmem:[%s194 + $0x38] sm:$0x1]
        %v211 = vld [vmem:[%s194 + $0x3c] sm:$0xf]
        %v212 = vld [vmem:[%s194 + $0x40] sm:$0xf]
        %v213 = vld [vmem:[%s194 + $0x44] sm:$0x1]
        %v214 = vld [vmem:[%s194 + $0x48] sm:$0xf]
        %v215 = vld [vmem:[%s194 + $0x4c] sm:$0xf]
        %v216 = vld [vmem:[%s194 + $0x50] sm:$0x1]
        %v217 = vld [vmem:[%s194 + $0x54] sm:$0xf]
        %v218 = vld [vmem:[%s194 + $0x58] sm:$0xf]
        %v219 = vld [vmem:[%s194 + $0x5c] sm:$0x1]
        %v220 = vld [vmem:[%s194 + $0x60] sm:$0xf]
        %v221 = vld [vmem:[%s194 + $0x64] sm:$0xf]
        %v222 = vld [vmem:[%s194 + $0x68] sm:$0x1]
        %v223 = vld [vmem:[%s194 + $0x6c] sm:$0xf]
        %v224 = vld [vmem:[%s194 + $0x70] sm:$0xf]
        %v225 = vld [vmem:[%s194 + $0x74] sm:$0x1]
        %v226 = vld [vmem:[%s194 + $0x78] sm:$0xf]
        %v227 = vld [vmem:[%s194 + $0x7c] sm:$0xf]
        %v228 = vld [vmem:[%s194 + $0x80] sm:$0x1]
        %v229 = vld [vmem:[%s194 + $0x84] sm:$0xf]
        %v230 = vld [vmem:[%s194 + $0x88] sm:$0xf]
        %v231 = vld [vmem:[%s194 + $0x8c] sm:$0x1]
        %v232 = vld [vmem:[%s194 + $0x90] sm:$0xf]
        %v233 = vld [vmem:[%s194 + $0x94] sm:$0xf]
        %v234 = vld [vmem:[%s194 + $0x98] sm:$0x1]
        %v235 = vld [vmem:[%s194 + $0x9c] sm:$0xf]
        %v236 = vld [vmem:[%s194 + $0xa0] sm:$0xf]
        %v237 = vld [vmem:[%s194 + $0xa4] sm:$0x1]
        %v238 = vld [vmem:[%s194 + $0xa8] sm:$0xf]
        %v239 = vld [vmem:[%s194 + $0xac] sm:$0xf]
        %v240 = vld [vmem:[%s194 + $0xb0] sm:$0x1]
        %v241 = vld [vmem:[%s194 + $0xb4] sm:$0xf]
        %v242 = vld [vmem:[%s194 + $0xb8] sm:$0xf]
        %v243 = vld [vmem:[%s194 + $0xbc] sm:$0x1]
        %v244 = vld [vmem:[%s194 + $0xc0] sm:$0xf]
        %v245 = vld [vmem:[%s194 + $0xc4] sm:$0xf]
        %v246 = vld [vmem:[%s194 + $0xc8] sm:$0x1]
        %v247 = vld [vmem:[%s194 + $0xcc] sm:$0xf]
        %v248 = vld [vmem:[%s194 + $0xd0] sm:$0xf]
        %v249 = vld [vmem:[%s194 + $0xd4] sm:$0x1]
        %v250 = vunpack.c.l.bf16 %v196
        %v251 = vunpack.c.l.bf16 %v197
        %v252 = vunpack.c.l.bf16 %v198
        %v253 = vunpack.c.l.bf16 %v199
        %v254 = vunpack.c.l.bf16 %v200
        %v255 = vunpack.c.l.bf16 %v201
        %v256 = vunpack.c.l.bf16 %v202
        %v257 = vunpack.c.l.bf16 %v203
        %v258 = vunpack.c.l.bf16 %v204
        %v259 = vunpack.c.l.bf16 %v205
        %v260 = vunpack.c.l.bf16 %v206
        %v261 = vunpack.c.l.bf16 %v207
        %v262 = vunpack.c.l.bf16 %v208
        %v263 = vunpack.c.l.bf16 %v209
        %v264 = vunpack.c.l.bf16 %v210
        %v265 = vunpack.c.l.bf16 %v211
        %v266 = vunpack.c.l.bf16 %v212
        %v267 = vunpack.c.l.bf16 %v213
        %v268 = vunpack.c.l.bf16 %v214
        %v269 = vunpack.c.l.bf16 %v215
        %v270 = vunpack.c.l.bf16 %v216
        %v271 = vunpack.c.l.bf16 %v217
        %v272 = vunpack.c.l.bf16 %v218
        %v273 = vunpack.c.l.bf16 %v219
        %v274 = vunpack.c.l.bf16 %v220
        %v275 = vunpack.c.l.bf16 %v221
        %v276 = vunpack.c.l.bf16 %v222
        %v277 = vunpack.c.l.bf16 %v223
        %v278 = vunpack.c.l.bf16 %v224
        %v279 = vunpack.c.l.bf16 %v225
        %v280 = vunpack.c.l.bf16 %v226
        %v281 = vunpack.c.l.bf16 %v227
        %v282 = vunpack.c.l.bf16 %v228
        %v283 = vunpack.c.l.bf16 %v229
        %v284 = vunpack.c.l.bf16 %v230
        %v285 = vunpack.c.l.bf16 %v231
        %v286 = vunpack.c.l.bf16 %v232
        %v287 = vunpack.c.l.bf16 %v233
        %v288 = vunpack.c.l.bf16 %v234
        %v289 = vunpack.c.l.bf16 %v235
        %v290 = vunpack.c.l.bf16 %v236
        %v291 = vunpack.c.l.bf16 %v237
        %v292 = vunpack.c.l.bf16 %v238
        %v293 = vunpack.c.l.bf16 %v239
        %v294 = vunpack.c.l.bf16 %v240
        %v295 = vunpack.c.l.bf16 %v241
        %v296 = vunpack.c.l.bf16 %v242
        %v297 = vunpack.c.l.bf16 %v243
        %v298 = vunpack.c.l.bf16 %v244
        %v299 = vunpack.c.l.bf16 %v245
        %v300 = vunpack.c.l.bf16 %v246
        %v301 = vunpack.c.l.bf16 %v247
        %v302 = vunpack.c.l.bf16 %v248
        %v303 = vunpack.c.l.bf16 %v249
        %vm352 = vcmask 1046528
        %v353 = vrot.slane %v250, 1
        %v354 = vrot.slane %v251, 1
        %v355 = vsel %vm352, %v353, %v354
        %v356 = vrot.slane %v252, 1
        %v357 = vsel %vm352, %v354, %v356
        %v358 = vrot.slane %v253, 1
        %v359 = vrot.slane %v254, 1
        %v360 = vsel %vm352, %v358, %v359
        %v361 = vrot.slane %v255, 1
        %v362 = vsel %vm352, %v359, %v361
        %v363 = vrot.slane %v256, 1
        %v364 = vrot.slane %v257, 1
        %v365 = vsel %vm352, %v363, %v364
        %v366 = vrot.slane %v258, 1
        %v367 = vsel %vm352, %v364, %v366
        %v368 = vrot.slane %v259, 1
        %v369 = vrot.slane %v260, 1
        %v370 = vsel %vm352, %v368, %v369
        %v371 = vrot.slane %v261, 1
        %v372 = vsel %vm352, %v369, %v371
        %v373 = vrot.slane %v262, 1
        %v374 = vrot.slane %v263, 1
        %v375 = vsel %vm352, %v373, %v374
        %v376 = vrot.slane %v264, 1
        %v377 = vsel %vm352, %v374, %v376
        %v378 = vrot.slane %v265, 1
        %v379 = vrot.slane %v266, 1
        %v380 = vsel %vm352, %v378, %v379
        %v381 = vrot.slane %v267, 1
        %v382 = vsel %vm352, %v379, %v381
        %v383 = vrot.slane %v268, 1
        %v384 = vrot.slane %v269, 1
        %v385 = vsel %vm352, %v383, %v384
        %v386 = vrot.slane %v270, 1
        %v387 = vsel %vm352, %v384, %v386
        %v388 = vrot.slane %v271, 1
        %v389 = vrot.slane %v272, 1
        %v390 = vsel %vm352, %v388, %v389
        %v391 = vrot.slane %v273, 1
        %v392 = vsel %vm352, %v389, %v391
        %v393 = vrot.slane %v274, 1
        %v394 = vrot.slane %v275, 1
        %v395 = vsel %vm352, %v393, %v394
        %v396 = vrot.slane %v276, 1
        %v397 = vsel %vm352, %v394, %v396
        %v398 = vrot.slane %v277, 1
        %v399 = vrot.slane %v278, 1
        %v400 = vsel %vm352, %v398, %v399
        %v401 = vrot.slane %v279, 1
        %v402 = vsel %vm352, %v399, %v401
        %v403 = vrot.slane %v280, 1
        %v404 = vrot.slane %v281, 1
        %v405 = vsel %vm352, %v403, %v404
        %v406 = vrot.slane %v282, 1
        %v407 = vsel %vm352, %v404, %v406
        %v408 = vrot.slane %v283, 1
        %v409 = vrot.slane %v284, 1
        %v410 = vsel %vm352, %v408, %v409
        %v411 = vrot.slane %v285, 1
        %v412 = vsel %vm352, %v409, %v411
        %v413 = vrot.slane %v286, 1
        %v414 = vrot.slane %v287, 1
        %v415 = vsel %vm352, %v413, %v414
        %v416 = vrot.slane %v288, 1
        %v417 = vsel %vm352, %v414, %v416
        %v418 = vrot.slane %v289, 1
        %v419 = vrot.slane %v290, 1
        %v420 = vsel %vm352, %v418, %v419
        %v421 = vrot.slane %v291, 1
        %v422 = vsel %vm352, %v419, %v421
        %v423 = vrot.slane %v292, 1
        %v424 = vrot.slane %v293, 1
        %v425 = vsel %vm352, %v423, %v424
        %v426 = vrot.slane %v294, 1
        %v427 = vsel %vm352, %v424, %v426
        %v428 = vrot.slane %v295, 1
        %v429 = vrot.slane %v296, 1
        %v430 = vsel %vm352, %v428, %v429
        %v431 = vrot.slane %v297, 1
        %v432 = vsel %vm352, %v429, %v431
        %vm433 = vcmask 1045504
        %v434 = vrot.slane %v250, 2
        %v435 = vrot.slane %v251, 2
        %v436 = vsel %vm433, %v434, %v435
        %v437 = vrot.slane %v252, 2
        %v438 = vsel %vm433, %v435, %v437
        %v439 = vrot.slane %v253, 2
        %v440 = vrot.slane %v254, 2
        %v441 = vsel %vm433, %v439, %v440
        %v442 = vrot.slane %v255, 2
        %v443 = vsel %vm433, %v440, %v442
        %v444 = vrot.slane %v256, 2
        %v445 = vrot.slane %v257, 2
        %v446 = vsel %vm433, %v444, %v445
        %v447 = vrot.slane %v258, 2
        %v448 = vsel %vm433, %v445, %v447
        %v449 = vrot.slane %v259, 2
        %v450 = vrot.slane %v260, 2
        %v451 = vsel %vm433, %v449, %v450
        %v452 = vrot.slane %v261, 2
        %v453 = vsel %vm433, %v450, %v452
        %v454 = vrot.slane %v262, 2
        %v455 = vrot.slane %v263, 2
        %v456 = vsel %vm433, %v454, %v455
        %v457 = vrot.slane %v264, 2
        %v458 = vsel %vm433, %v455, %v457
        %v459 = vrot.slane %v265, 2
        %v460 = vrot.slane %v266, 2
        %v461 = vsel %vm433, %v459, %v460
        %v462 = vrot.slane %v267, 2
        %v463 = vsel %vm433, %v460, %v462
        %v464 = vrot.slane %v268, 2
        %v465 = vrot.slane %v269, 2
        %v466 = vsel %vm433, %v464, %v465
        %v467 = vrot.slane %v270, 2
        %v468 = vsel %vm433, %v465, %v467
        %v469 = vrot.slane %v271, 2
        %v470 = vrot.slane %v272, 2
        %v471 = vsel %vm433, %v469, %v470
        %v472 = vrot.slane %v273, 2
        %v473 = vsel %vm433, %v470, %v472
        %v474 = vrot.slane %v274, 2
        %v475 = vrot.slane %v275, 2
        %v476 = vsel %vm433, %v474, %v475
        %v477 = vrot.slane %v276, 2
        %v478 = vsel %vm433, %v475, %v477
        %v479 = vrot.slane %v277, 2
        %v480 = vrot.slane %v278, 2
        %v481 = vsel %vm433, %v479, %v480
        %v482 = vrot.slane %v279, 2
        %v483 = vsel %vm433, %v480, %v482
        %v484 = vrot.slane %v280, 2
        %v485 = vrot.slane %v281, 2
        %v486 = vsel %vm433, %v484, %v485
        %v487 = vrot.slane %v282, 2
        %v488 = vsel %vm433, %v485, %v487
        %v489 = vrot.slane %v283, 2
        %v490 = vrot.slane %v284, 2
        %v491 = vsel %vm433, %v489, %v490
        %v492 = vrot.slane %v285, 2
        %v493 = vsel %vm433, %v490, %v492
        %v494 = vrot.slane %v286, 2
        %v495 = vrot.slane %v287, 2
        %v496 = vsel %vm433, %v494, %v495
        %v497 = vrot.slane %v288, 2
        %v498 = vsel %vm433, %v495, %v497
        %v499 = vrot.slane %v289, 2
        %v500 = vrot.slane %v290, 2
        %v501 = vsel %vm433, %v499, %v500
        %v502 = vrot.slane %v291, 2
        %v503 = vsel %vm433, %v500, %v502
        %v504 = vrot.slane %v292, 2
        %v505 = vrot.slane %v293, 2
        %v506 = vsel %vm433, %v504, %v505
        %v507 = vrot.slane %v294, 2
        %v508 = vsel %vm433, %v505, %v507
        %v509 = vrot.slane %v295, 2
        %v510 = vrot.slane %v296, 2
        %v511 = vsel %vm433, %v509, %v510
        %v512 = vrot.slane %v297, 2
        %v513 = vsel %vm433, %v510, %v512
        %v517 = vrot.slane %v298, 1
        %v518 = vrot.slane %v299, 1
        %v519 = vsel %vm352, %v517, %v518
        %v520 = vrot.slane %v300, 1
        %v521 = vsel %vm352, %v518, %v520
        %v522 = vrot.slane %v298, 2
        %v523 = vrot.slane %v299, 2
        %v524 = vsel %vm433, %v522, %v523
        %v525 = vrot.slane %v300, 2
        %v526 = vsel %vm433, %v523, %v525
        %v530 = vrot.slane %v301, 1
        %v531 = vrot.slane %v302, 1
        %v532 = vsel %vm352, %v530, %v531
        %v533 = vrot.slane %v303, 1
        %v534 = vsel %vm352, %v531, %v533
        %v535 = vrot.slane %v301, 2
        %v536 = vrot.slane %v302, 2
        %v537 = vsel %vm433, %v535, %v536
        %v538 = vrot.slane %v303, 2
        %v539 = vsel %vm433, %v536, %v538
        %540 = vrot.lane.b32.xlu0 %v355, 4
        %v541 = vpop.permute.xlu0 %540
        %542 = vrot.lane.b32.xlu0 %v357, 4
        %v543 = vpop.permute.xlu0 %542
        %544 = vrot.lane.b32.xlu0 %v360, 4
        %v545 = vpop.permute.xlu0 %544
        %546 = vrot.lane.b32.xlu0 %v362, 4
        %v547 = vpop.permute.xlu0 %546
        %548 = vrot.lane.b32.xlu0 %v365, 4
        %v549 = vpop.permute.xlu0 %548
        %550 = vrot.lane.b32.xlu0 %v367, 4
        %v551 = vpop.permute.xlu0 %550
        %552 = vrot.lane.b32.xlu0 %v370, 4
        %v553 = vpop.permute.xlu0 %552
        %554 = vrot.lane.b32.xlu0 %v372, 4
        %v555 = vpop.permute.xlu0 %554
        %556 = vrot.lane.b32.xlu0 %v375, 4
        %v557 = vpop.permute.xlu0 %556
        %558 = vrot.lane.b32.xlu0 %v377, 4
        %v559 = vpop.permute.xlu0 %558
        %560 = vrot.lane.b32.xlu0 %v380, 4
        %v561 = vpop.permute.xlu0 %560
        %562 = vrot.lane.b32.xlu0 %v382, 4
        %v563 = vpop.permute.xlu0 %562
        %564 = vrot.lane.b32.xlu0 %v385, 4
        %v565 = vpop.permute.xlu0 %564
        %566 = vrot.lane.b32.xlu0 %v387, 4
        %v567 = vpop.permute.xlu0 %566
        %568 = vrot.lane.b32.xlu0 %v390, 4
        %v569 = vpop.permute.xlu0 %568
        %570 = vrot.lane.b32.xlu0 %v392, 4
        %v571 = vpop.permute.xlu0 %570
        %572 = vrot.lane.b32.xlu0 %v395, 4
        %v573 = vpop.permute.xlu0 %572
        %574 = vrot.lane.b32.xlu0 %v397, 4
        %v575 = vpop.permute.xlu0 %574
        %576 = vrot.lane.b32.xlu0 %v400, 4
        %v577 = vpop.permute.xlu0 %576
        %578 = vrot.lane.b32.xlu0 %v402, 4
        %v579 = vpop.permute.xlu0 %578
        %580 = vrot.lane.b32.xlu0 %v405, 4
        %v581 = vpop.permute.xlu0 %580
        %582 = vrot.lane.b32.xlu0 %v407, 4
        %v583 = vpop.permute.xlu0 %582
        %584 = vrot.lane.b32.xlu0 %v410, 4
        %v585 = vpop.permute.xlu0 %584
        %586 = vrot.lane.b32.xlu0 %v412, 4
        %v587 = vpop.permute.xlu0 %586
        %588 = vrot.lane.b32.xlu0 %v415, 4
        %v589 = vpop.permute.xlu0 %588
        %590 = vrot.lane.b32.xlu0 %v417, 4
        %v591 = vpop.permute.xlu0 %590
        %592 = vrot.lane.b32.xlu0 %v420, 4
        %v593 = vpop.permute.xlu0 %592
        %594 = vrot.lane.b32.xlu0 %v422, 4
        %v595 = vpop.permute.xlu0 %594
        %596 = vrot.lane.b32.xlu0 %v425, 4
        %v597 = vpop.permute.xlu0 %596
        %598 = vrot.lane.b32.xlu0 %v427, 4
        %v599 = vpop.permute.xlu0 %598
        %600 = vrot.lane.b32.xlu0 %v430, 4
        %v601 = vpop.permute.xlu0 %600
        %602 = vrot.lane.b32.xlu0 %v432, 4
        %v603 = vpop.permute.xlu0 %602
        %636 = vrot.lane.b32.xlu0 %v436, 8
        %v637 = vpop.permute.xlu0 %636
        %638 = vrot.lane.b32.xlu0 %v438, 8
        %v639 = vpop.permute.xlu0 %638
        %640 = vrot.lane.b32.xlu0 %v441, 8
        %v641 = vpop.permute.xlu0 %640
        %642 = vrot.lane.b32.xlu0 %v443, 8
        %v643 = vpop.permute.xlu0 %642
        %644 = vrot.lane.b32.xlu0 %v446, 8
        %v645 = vpop.permute.xlu0 %644
        %646 = vrot.lane.b32.xlu0 %v448, 8
        %v647 = vpop.permute.xlu0 %646
        %648 = vrot.lane.b32.xlu0 %v451, 8
        %v649 = vpop.permute.xlu0 %648
        %650 = vrot.lane.b32.xlu0 %v453, 8
        %v651 = vpop.permute.xlu0 %650
        %652 = vrot.lane.b32.xlu0 %v456, 8
        %v653 = vpop.permute.xlu0 %652
        %654 = vrot.lane.b32.xlu0 %v458, 8
        %v655 = vpop.permute.xlu0 %654
        %656 = vrot.lane.b32.xlu0 %v461, 8
        %v657 = vpop.permute.xlu0 %656
        %658 = vrot.lane.b32.xlu0 %v463, 8
        %v659 = vpop.permute.xlu0 %658
        %660 = vrot.lane.b32.xlu0 %v466, 8
        %v661 = vpop.permute.xlu0 %660
        %662 = vrot.lane.b32.xlu0 %v468, 8
        %v663 = vpop.permute.xlu0 %662
        %664 = vrot.lane.b32.xlu0 %v471, 8
        %v665 = vpop.permute.xlu0 %664
        %666 = vrot.lane.b32.xlu0 %v473, 8
        %v667 = vpop.permute.xlu0 %666
        %668 = vrot.lane.b32.xlu0 %v476, 8
        %v669 = vpop.permute.xlu0 %668
        %670 = vrot.lane.b32.xlu0 %v478, 8
        %v671 = vpop.permute.xlu0 %670
        %672 = vrot.lane.b32.xlu0 %v481, 8
        %v673 = vpop.permute.xlu0 %672
        %674 = vrot.lane.b32.xlu0 %v483, 8
        %v675 = vpop.permute.xlu0 %674
        %676 = vrot.lane.b32.xlu0 %v486, 8
        %v677 = vpop.permute.xlu0 %676
        %678 = vrot.lane.b32.xlu0 %v488, 8
        %v679 = vpop.permute.xlu0 %678
        %680 = vrot.lane.b32.xlu0 %v491, 8
        %v681 = vpop.permute.xlu0 %680
        %682 = vrot.lane.b32.xlu0 %v493, 8
        %v683 = vpop.permute.xlu0 %682
        %684 = vrot.lane.b32.xlu0 %v496, 8
        %v685 = vpop.permute.xlu0 %684
        %686 = vrot.lane.b32.xlu0 %v498, 8
        %v687 = vpop.permute.xlu0 %686
        %688 = vrot.lane.b32.xlu0 %v501, 8
        %v689 = vpop.permute.xlu0 %688
        %690 = vrot.lane.b32.xlu0 %v503, 8
        %v691 = vpop.permute.xlu0 %690
        %692 = vrot.lane.b32.xlu0 %v506, 8
        %v693 = vpop.permute.xlu0 %692
        %694 = vrot.lane.b32.xlu0 %v508, 8
        %v695 = vpop.permute.xlu0 %694
        %696 = vrot.lane.b32.xlu0 %v511, 8
        %v697 = vpop.permute.xlu0 %696
        %698 = vrot.lane.b32.xlu0 %v513, 8
        %v699 = vpop.permute.xlu0 %698
        %732 = vrot.lane.b32.xlu0 %v253, 12
        %v733 = vpop.permute.xlu0 %732
        %734 = vrot.lane.b32.xlu0 %v254, 12
        %v735 = vpop.permute.xlu0 %734
        %736 = vrot.lane.b32.xlu0 %v256, 12
        %v737 = vpop.permute.xlu0 %736
        %738 = vrot.lane.b32.xlu0 %v257, 12
        %v739 = vpop.permute.xlu0 %738
        %740 = vrot.lane.b32.xlu0 %v259, 12
        %v741 = vpop.permute.xlu0 %740
        %742 = vrot.lane.b32.xlu0 %v260, 12
        %v743 = vpop.permute.xlu0 %742
        %744 = vrot.lane.b32.xlu0 %v262, 12
        %v745 = vpop.permute.xlu0 %744
        %746 = vrot.lane.b32.xlu0 %v263, 12
        %v747 = vpop.permute.xlu0 %746
        %748 = vrot.lane.b32.xlu0 %v265, 12
        %v749 = vpop.permute.xlu0 %748
        %750 = vrot.lane.b32.xlu0 %v266, 12
        %v751 = vpop.permute.xlu0 %750
        %752 = vrot.lane.b32.xlu0 %v268, 12
        %v753 = vpop.permute.xlu0 %752
        %754 = vrot.lane.b32.xlu0 %v269, 12
        %v755 = vpop.permute.xlu0 %754
        %756 = vrot.lane.b32.xlu0 %v271, 12
        %v757 = vpop.permute.xlu0 %756
        %758 = vrot.lane.b32.xlu0 %v272, 12
        %v759 = vpop.permute.xlu0 %758
        %760 = vrot.lane.b32.xlu0 %v274, 12
        %v761 = vpop.permute.xlu0 %760
        %762 = vrot.lane.b32.xlu0 %v275, 12
        %v763 = vpop.permute.xlu0 %762
        %764 = vrot.lane.b32.xlu0 %v277, 12
        %v765 = vpop.permute.xlu0 %764
        %766 = vrot.lane.b32.xlu0 %v278, 12
        %v767 = vpop.permute.xlu0 %766
        %768 = vrot.lane.b32.xlu0 %v280, 12
        %v769 = vpop.permute.xlu0 %768
        %770 = vrot.lane.b32.xlu0 %v281, 12
        %v771 = vpop.permute.xlu0 %770
        %772 = vrot.lane.b32.xlu0 %v283, 12
        %v773 = vpop.permute.xlu0 %772
        %774 = vrot.lane.b32.xlu0 %v284, 12
        %v775 = vpop.permute.xlu0 %774
        %776 = vrot.lane.b32.xlu0 %v286, 12
        %v777 = vpop.permute.xlu0 %776
        %778 = vrot.lane.b32.xlu0 %v287, 12
        %v779 = vpop.permute.xlu0 %778
        %780 = vrot.lane.b32.xlu0 %v289, 12
        %v781 = vpop.permute.xlu0 %780
        %782 = vrot.lane.b32.xlu0 %v290, 12
        %v783 = vpop.permute.xlu0 %782
        %784 = vrot.lane.b32.xlu0 %v292, 12
        %v785 = vpop.permute.xlu0 %784
        %786 = vrot.lane.b32.xlu0 %v293, 12
        %v787 = vpop.permute.xlu0 %786
        %788 = vrot.lane.b32.xlu0 %v295, 12
        %v789 = vpop.permute.xlu0 %788
        %790 = vrot.lane.b32.xlu0 %v296, 12
        %v791 = vpop.permute.xlu0 %790
        %792 = vrot.lane.b32.xlu0 %v298, 12
        %v793 = vpop.permute.xlu0 %792
        %794 = vrot.lane.b32.xlu0 %v299, 12
        %v795 = vpop.permute.xlu0 %794
        %828 = vrot.lane.b32.xlu0 %v360, 16
        %v829 = vpop.permute.xlu0 %828
        %830 = vrot.lane.b32.xlu0 %v362, 16
        %v831 = vpop.permute.xlu0 %830
        %832 = vrot.lane.b32.xlu0 %v365, 16
        %v833 = vpop.permute.xlu0 %832
        %834 = vrot.lane.b32.xlu0 %v367, 16
        %v835 = vpop.permute.xlu0 %834
        %836 = vrot.lane.b32.xlu0 %v370, 16
        %v837 = vpop.permute.xlu0 %836
        %838 = vrot.lane.b32.xlu0 %v372, 16
        %v839 = vpop.permute.xlu0 %838
        %840 = vrot.lane.b32.xlu0 %v375, 16
        %v841 = vpop.permute.xlu0 %840
        %842 = vrot.lane.b32.xlu0 %v377, 16
        %v843 = vpop.permute.xlu0 %842
        %844 = vrot.lane.b32.xlu0 %v380, 16
        %v845 = vpop.permute.xlu0 %844
        %846 = vrot.lane.b32.xlu0 %v382, 16
        %v847 = vpop.permute.xlu0 %846
        %848 = vrot.lane.b32.xlu0 %v385, 16
        %v849 = vpop.permute.xlu0 %848
        %850 = vrot.lane.b32.xlu0 %v387, 16
        %v851 = vpop.permute.xlu0 %850
        %852 = vrot.lane.b32.xlu0 %v390, 16
        %v853 = vpop.permute.xlu0 %852
        %854 = vrot.lane.b32.xlu0 %v392, 16
        %v855 = vpop.permute.xlu0 %854
        %856 = vrot.lane.b32.xlu0 %v395, 16
        %v857 = vpop.permute.xlu0 %856
        %858 = vrot.lane.b32.xlu0 %v397, 16
        %v859 = vpop.permute.xlu0 %858
        %860 = vrot.lane.b32.xlu0 %v400, 16
        %v861 = vpop.permute.xlu0 %860
        %862 = vrot.lane.b32.xlu0 %v402, 16
        %v863 = vpop.permute.xlu0 %862
        %864 = vrot.lane.b32.xlu0 %v405, 16
        %v865 = vpop.permute.xlu0 %864
        %866 = vrot.lane.b32.xlu0 %v407, 16
        %v867 = vpop.permute.xlu0 %866
        %868 = vrot.lane.b32.xlu0 %v410, 16
        %v869 = vpop.permute.xlu0 %868
        %870 = vrot.lane.b32.xlu0 %v412, 16
        %v871 = vpop.permute.xlu0 %870
        %872 = vrot.lane.b32.xlu0 %v415, 16
        %v873 = vpop.permute.xlu0 %872
        %874 = vrot.lane.b32.xlu0 %v417, 16
        %v875 = vpop.permute.xlu0 %874
        %876 = vrot.lane.b32.xlu0 %v420, 16
        %v877 = vpop.permute.xlu0 %876
        %878 = vrot.lane.b32.xlu0 %v422, 16
        %v879 = vpop.permute.xlu0 %878
        %880 = vrot.lane.b32.xlu0 %v425, 16
        %v881 = vpop.permute.xlu0 %880
        %882 = vrot.lane.b32.xlu0 %v427, 16
        %v883 = vpop.permute.xlu0 %882
        %884 = vrot.lane.b32.xlu0 %v430, 16
        %v885 = vpop.permute.xlu0 %884
        %886 = vrot.lane.b32.xlu0 %v432, 16
        %v887 = vpop.permute.xlu0 %886
        %888 = vrot.lane.b32.xlu0 %v519, 16
        %v889 = vpop.permute.xlu0 %888
        %890 = vrot.lane.b32.xlu0 %v521, 16
        %v891 = vpop.permute.xlu0 %890
        %924 = vrot.lane.b32.xlu0 %v441, 20
        %v925 = vpop.permute.xlu0 %924
        %926 = vrot.lane.b32.xlu0 %v443, 20
        %v927 = vpop.permute.xlu0 %926
        %928 = vrot.lane.b32.xlu0 %v446, 20
        %v929 = vpop.permute.xlu0 %928
        %930 = vrot.lane.b32.xlu0 %v448, 20
        %v931 = vpop.permute.xlu0 %930
        %932 = vrot.lane.b32.xlu0 %v451, 20
        %v933 = vpop.permute.xlu0 %932
        %934 = vrot.lane.b32.xlu0 %v453, 20
        %v935 = vpop.permute.xlu0 %934
        %936 = vrot.lane.b32.xlu0 %v456, 20
        %v937 = vpop.permute.xlu0 %936
        %938 = vrot.lane.b32.xlu0 %v458, 20
        %v939 = vpop.permute.xlu0 %938
        %940 = vrot.lane.b32.xlu0 %v461, 20
        %v941 = vpop.permute.xlu0 %940
        %942 = vrot.lane.b32.xlu0 %v463, 20
        %v943 = vpop.permute.xlu0 %942
        %944 = vrot.lane.b32.xlu0 %v466, 20
        %v945 = vpop.permute.xlu0 %944
        %946 = vrot.lane.b32.xlu0 %v468, 20
        %v947 = vpop.permute.xlu0 %946
        %948 = vrot.lane.b32.xlu0 %v471, 20
        %v949 = vpop.permute.xlu0 %948
        %950 = vrot.lane.b32.xlu0 %v473, 20
        %v951 = vpop.permute.xlu0 %950
        %952 = vrot.lane.b32.xlu0 %v476, 20
        %v953 = vpop.permute.xlu0 %952
        %954 = vrot.lane.b32.xlu0 %v478, 20
        %v955 = vpop.permute.xlu0 %954
        %956 = vrot.lane.b32.xlu0 %v481, 20
        %v957 = vpop.permute.xlu0 %956
        %958 = vrot.lane.b32.xlu0 %v483, 20
        %v959 = vpop.permute.xlu0 %958
        %960 = vrot.lane.b32.xlu0 %v486, 20
        %v961 = vpop.permute.xlu0 %960
        %962 = vrot.lane.b32.xlu0 %v488, 20
        %v963 = vpop.permute.xlu0 %962
        %964 = vrot.lane.b32.xlu0 %v491, 20
        %v965 = vpop.permute.xlu0 %964
        %966 = vrot.lane.b32.xlu0 %v493, 20
        %v967 = vpop.permute.xlu0 %966
        %968 = vrot.lane.b32.xlu0 %v496, 20
        %v969 = vpop.permute.xlu0 %968
        %970 = vrot.lane.b32.xlu0 %v498, 20
        %v971 = vpop.permute.xlu0 %970
        %972 = vrot.lane.b32.xlu0 %v501, 20
        %v973 = vpop.permute.xlu0 %972
        %974 = vrot.lane.b32.xlu0 %v503, 20
        %v975 = vpop.permute.xlu0 %974
        %976 = vrot.lane.b32.xlu0 %v506, 20
        %v977 = vpop.permute.xlu0 %976
        %978 = vrot.lane.b32.xlu0 %v508, 20
        %v979 = vpop.permute.xlu0 %978
        %980 = vrot.lane.b32.xlu0 %v511, 20
        %v981 = vpop.permute.xlu0 %980
        %982 = vrot.lane.b32.xlu0 %v513, 20
        %v983 = vpop.permute.xlu0 %982
        %984 = vrot.lane.b32.xlu0 %v524, 20
        %v985 = vpop.permute.xlu0 %984
        %986 = vrot.lane.b32.xlu0 %v526, 20
        %v987 = vpop.permute.xlu0 %986
        %1020 = vrot.lane.b32.xlu0 %v256, 24
        %v1021 = vpop.permute.xlu0 %1020
        %1022 = vrot.lane.b32.xlu0 %v257, 24
        %v1023 = vpop.permute.xlu0 %1022
        %1024 = vrot.lane.b32.xlu0 %v259, 24
        %v1025 = vpop.permute.xlu0 %1024
        %1026 = vrot.lane.b32.xlu0 %v260, 24
        %v1027 = vpop.permute.xlu0 %1026
        %1028 = vrot.lane.b32.xlu0 %v262, 24
        %v1029 = vpop.permute.xlu0 %1028
        %1030 = vrot.lane.b32.xlu0 %v263, 24
        %v1031 = vpop.permute.xlu0 %1030
        %1032 = vrot.lane.b32.xlu0 %v265, 24
        %v1033 = vpop.permute.xlu0 %1032
        %1034 = vrot.lane.b32.xlu0 %v266, 24
        %v1035 = vpop.permute.xlu0 %1034
        %1036 = vrot.lane.b32.xlu0 %v268, 24
        %v1037 = vpop.permute.xlu0 %1036
        %1038 = vrot.lane.b32.xlu0 %v269, 24
        %v1039 = vpop.permute.xlu0 %1038
        %1040 = vrot.lane.b32.xlu0 %v271, 24
        %v1041 = vpop.permute.xlu0 %1040
        %1042 = vrot.lane.b32.xlu0 %v272, 24
        %v1043 = vpop.permute.xlu0 %1042
        %1044 = vrot.lane.b32.xlu0 %v274, 24
        %v1045 = vpop.permute.xlu0 %1044
        %1046 = vrot.lane.b32.xlu0 %v275, 24
        %v1047 = vpop.permute.xlu0 %1046
        %1048 = vrot.lane.b32.xlu0 %v277, 24
        %v1049 = vpop.permute.xlu0 %1048
        %1050 = vrot.lane.b32.xlu0 %v278, 24
        %v1051 = vpop.permute.xlu0 %1050
        %1052 = vrot.lane.b32.xlu0 %v280, 24
        %v1053 = vpop.permute.xlu0 %1052
        %1054 = vrot.lane.b32.xlu0 %v281, 24
        %v1055 = vpop.permute.xlu0 %1054
        %1056 = vrot.lane.b32.xlu0 %v283, 24
        %v1057 = vpop.permute.xlu0 %1056
        %1058 = vrot.lane.b32.xlu0 %v284, 24
        %v1059 = vpop.permute.xlu0 %1058
        %1060 = vrot.lane.b32.xlu0 %v286, 24
        %v1061 = vpop.permute.xlu0 %1060
        %1062 = vrot.lane.b32.xlu0 %v287, 24
        %v1063 = vpop.permute.xlu0 %1062
        %1064 = vrot.lane.b32.xlu0 %v289, 24
        %v1065 = vpop.permute.xlu0 %1064
        %1066 = vrot.lane.b32.xlu0 %v290, 24
        %v1067 = vpop.permute.xlu0 %1066
        %1068 = vrot.lane.b32.xlu0 %v292, 24
        %v1069 = vpop.permute.xlu0 %1068
        %1070 = vrot.lane.b32.xlu0 %v293, 24
        %v1071 = vpop.permute.xlu0 %1070
        %1072 = vrot.lane.b32.xlu0 %v295, 24
        %v1073 = vpop.permute.xlu0 %1072
        %1074 = vrot.lane.b32.xlu0 %v296, 24
        %v1075 = vpop.permute.xlu0 %1074
        %1076 = vrot.lane.b32.xlu0 %v298, 24
        %v1077 = vpop.permute.xlu0 %1076
        %1078 = vrot.lane.b32.xlu0 %v299, 24
        %v1079 = vpop.permute.xlu0 %1078
        %1080 = vrot.lane.b32.xlu0 %v301, 24
        %v1081 = vpop.permute.xlu0 %1080
        %1082 = vrot.lane.b32.xlu0 %v302, 24
        %v1083 = vpop.permute.xlu0 %1082
        %1116 = vrot.lane.b32.xlu0 %v365, 28
        %v1117 = vpop.permute.xlu0 %1116
        %1118 = vrot.lane.b32.xlu0 %v367, 28
        %v1119 = vpop.permute.xlu0 %1118
        %1120 = vrot.lane.b32.xlu0 %v370, 28
        %v1121 = vpop.permute.xlu0 %1120
        %1122 = vrot.lane.b32.xlu0 %v372, 28
        %v1123 = vpop.permute.xlu0 %1122
        %1124 = vrot.lane.b32.xlu0 %v375, 28
        %v1125 = vpop.permute.xlu0 %1124
        %1126 = vrot.lane.b32.xlu0 %v377, 28
        %v1127 = vpop.permute.xlu0 %1126
        %1128 = vrot.lane.b32.xlu0 %v380, 28
        %v1129 = vpop.permute.xlu0 %1128
        %1130 = vrot.lane.b32.xlu0 %v382, 28
        %v1131 = vpop.permute.xlu0 %1130
        %1132 = vrot.lane.b32.xlu0 %v385, 28
        %v1133 = vpop.permute.xlu0 %1132
        %1134 = vrot.lane.b32.xlu0 %v387, 28
        %v1135 = vpop.permute.xlu0 %1134
        %1136 = vrot.lane.b32.xlu0 %v390, 28
        %v1137 = vpop.permute.xlu0 %1136
        %1138 = vrot.lane.b32.xlu0 %v392, 28
        %v1139 = vpop.permute.xlu0 %1138
        %1140 = vrot.lane.b32.xlu0 %v395, 28
        %v1141 = vpop.permute.xlu0 %1140
        %1142 = vrot.lane.b32.xlu0 %v397, 28
        %v1143 = vpop.permute.xlu0 %1142
        %1144 = vrot.lane.b32.xlu0 %v400, 28
        %v1145 = vpop.permute.xlu0 %1144
        %1146 = vrot.lane.b32.xlu0 %v402, 28
        %v1147 = vpop.permute.xlu0 %1146
        %1148 = vrot.lane.b32.xlu0 %v405, 28
        %v1149 = vpop.permute.xlu0 %1148
        %1150 = vrot.lane.b32.xlu0 %v407, 28
        %v1151 = vpop.permute.xlu0 %1150
        %1152 = vrot.lane.b32.xlu0 %v410, 28
        %v1153 = vpop.permute.xlu0 %1152
        %1154 = vrot.lane.b32.xlu0 %v412, 28
        %v1155 = vpop.permute.xlu0 %1154
        %1156 = vrot.lane.b32.xlu0 %v415, 28
        %v1157 = vpop.permute.xlu0 %1156
        %1158 = vrot.lane.b32.xlu0 %v417, 28
        %v1159 = vpop.permute.xlu0 %1158
        %1160 = vrot.lane.b32.xlu0 %v420, 28
        %v1161 = vpop.permute.xlu0 %1160
        %1162 = vrot.lane.b32.xlu0 %v422, 28
        %v1163 = vpop.permute.xlu0 %1162
        %1164 = vrot.lane.b32.xlu0 %v425, 28
        %v1165 = vpop.permute.xlu0 %1164
        %1166 = vrot.lane.b32.xlu0 %v427, 28
        %v1167 = vpop.permute.xlu0 %1166
        %1168 = vrot.lane.b32.xlu0 %v430, 28
        %v1169 = vpop.permute.xlu0 %1168
        %1170 = vrot.lane.b32.xlu0 %v432, 28
        %v1171 = vpop.permute.xlu0 %1170
        %1172 = vrot.lane.b32.xlu0 %v519, 28
        %v1173 = vpop.permute.xlu0 %1172
        %1174 = vrot.lane.b32.xlu0 %v521, 28
        %v1175 = vpop.permute.xlu0 %1174
        %1176 = vrot.lane.b32.xlu0 %v532, 28
        %v1177 = vpop.permute.xlu0 %1176
        %1178 = vrot.lane.b32.xlu0 %v534, 28
        %v1179 = vpop.permute.xlu0 %1178
        %1212 = vrot.lane.b32.xlu0 %v446, 32
        %v1213 = vpop.permute.xlu0 %1212
        %1214 = vrot.lane.b32.xlu0 %v448, 32
        %v1215 = vpop.permute.xlu0 %1214
        %1216 = vrot.lane.b32.xlu0 %v451, 32
        %v1217 = vpop.permute.xlu0 %1216
        %1218 = vrot.lane.b32.xlu0 %v453, 32
        %v1219 = vpop.permute.xlu0 %1218
        %1220 = vrot.lane.b32.xlu0 %v456, 32
        %v1221 = vpop.permute.xlu0 %1220
        %1222 = vrot.lane.b32.xlu0 %v458, 32
        %v1223 = vpop.permute.xlu0 %1222
        %1224 = vrot.lane.b32.xlu0 %v461, 32
        %v1225 = vpop.permute.xlu0 %1224
        %1226 = vrot.lane.b32.xlu0 %v463, 32
        %v1227 = vpop.permute.xlu0 %1226
        %1228 = vrot.lane.b32.xlu0 %v466, 32
        %v1229 = vpop.permute.xlu0 %1228
        %1230 = vrot.lane.b32.xlu0 %v468, 32
        %v1231 = vpop.permute.xlu0 %1230
        %1232 = vrot.lane.b32.xlu0 %v471, 32
        %v1233 = vpop.permute.xlu0 %1232
        %1234 = vrot.lane.b32.xlu0 %v473, 32
        %v1235 = vpop.permute.xlu0 %1234
        %1236 = vrot.lane.b32.xlu0 %v476, 32
        %v1237 = vpop.permute.xlu0 %1236
        %1238 = vrot.lane.b32.xlu0 %v478, 32
        %v1239 = vpop.permute.xlu0 %1238
        %1240 = vrot.lane.b32.xlu0 %v481, 32
        %v1241 = vpop.permute.xlu0 %1240
        %1242 = vrot.lane.b32.xlu0 %v483, 32
        %v1243 = vpop.permute.xlu0 %1242
        %1244 = vrot.lane.b32.xlu0 %v486, 32
        %v1245 = vpop.permute.xlu0 %1244
        %1246 = vrot.lane.b32.xlu0 %v488, 32
        %v1247 = vpop.permute.xlu0 %1246
        %1248 = vrot.lane.b32.xlu0 %v491, 32
        %v1249 = vpop.permute.xlu0 %1248
        %1250 = vrot.lane.b32.xlu0 %v493, 32
        %v1251 = vpop.permute.xlu0 %1250
        %1252 = vrot.lane.b32.xlu0 %v496, 32
        %v1253 = vpop.permute.xlu0 %1252
        %1254 = vrot.lane.b32.xlu0 %v498, 32
        %v1255 = vpop.permute.xlu0 %1254
        %1256 = vrot.lane.b32.xlu0 %v501, 32
        %v1257 = vpop.permute.xlu0 %1256
        %1258 = vrot.lane.b32.xlu0 %v503, 32
        %v1259 = vpop.permute.xlu0 %1258
        %1260 = vrot.lane.b32.xlu0 %v506, 32
        %v1261 = vpop.permute.xlu0 %1260
        %1262 = vrot.lane.b32.xlu0 %v508, 32
        %v1263 = vpop.permute.xlu0 %1262
        %1264 = vrot.lane.b32.xlu0 %v511, 32
        %v1265 = vpop.permute.xlu0 %1264
        %1266 = vrot.lane.b32.xlu0 %v513, 32
        %v1267 = vpop.permute.xlu0 %1266
        %1268 = vrot.lane.b32.xlu0 %v524, 32
        %v1269 = vpop.permute.xlu0 %1268
        %1270 = vrot.lane.b32.xlu0 %v526, 32
        %v1271 = vpop.permute.xlu0 %1270
        %1272 = vrot.lane.b32.xlu0 %v537, 32
        %v1273 = vpop.permute.xlu0 %1272
        %1274 = vrot.lane.b32.xlu0 %v539, 32
        %v1275 = vpop.permute.xlu0 %1274
        %vm1308 = vcmask 31744
        %v1309 = vsel %vm1308, %v250, %v541
        %v1310 = vsel %vm1308, %v251, %v543
        %v1311 = vsel %vm1308, %v253, %v545
        %v1312 = vsel %vm1308, %v254, %v547
        %v1313 = vsel %vm1308, %v256, %v549
        %v1314 = vsel %vm1308, %v257, %v551
        %v1315 = vsel %vm1308, %v259, %v553
        %v1316 = vsel %vm1308, %v260, %v555
        %v1317 = vsel %vm1308, %v262, %v557
        %v1318 = vsel %vm1308, %v263, %v559
        %v1319 = vsel %vm1308, %v265, %v561
        %v1320 = vsel %vm1308, %v266, %v563
        %v1321 = vsel %vm1308, %v268, %v565
        %v1322 = vsel %vm1308, %v269, %v567
        %v1323 = vsel %vm1308, %v271, %v569
        %v1324 = vsel %vm1308, %v272, %v571
        %v1325 = vsel %vm1308, %v274, %v573
        %v1326 = vsel %vm1308, %v275, %v575
        %v1327 = vsel %vm1308, %v277, %v577
        %v1328 = vsel %vm1308, %v278, %v579
        %v1329 = vsel %vm1308, %v280, %v581
        %v1330 = vsel %vm1308, %v281, %v583
        %v1331 = vsel %vm1308, %v283, %v585
        %v1332 = vsel %vm1308, %v284, %v587
        %v1333 = vsel %vm1308, %v286, %v589
        %v1334 = vsel %vm1308, %v287, %v591
        %v1335 = vsel %vm1308, %v289, %v593
        %v1336 = vsel %vm1308, %v290, %v595
        %v1337 = vsel %vm1308, %v292, %v597
        %v1338 = vsel %vm1308, %v293, %v599
        %v1339 = vsel %vm1308, %v295, %v601
        %v1340 = vsel %vm1308, %v296, %v603
        %vm1341 = vcmask 64512
        %v1342 = vsel %vm1341, %v1309, %v637
        %v1343 = vsel %vm1341, %v1310, %v639
        %v1344 = vsel %vm1341, %v1311, %v641
        %v1345 = vsel %vm1341, %v1312, %v643
        %v1346 = vsel %vm1341, %v1313, %v645
        %v1347 = vsel %vm1341, %v1314, %v647
        %v1348 = vsel %vm1341, %v1315, %v649
        %v1349 = vsel %vm1341, %v1316, %v651
        %v1350 = vsel %vm1341, %v1317, %v653
        %v1351 = vsel %vm1341, %v1318, %v655
        %v1352 = vsel %vm1341, %v1319, %v657
        %v1353 = vsel %vm1341, %v1320, %v659
        %v1354 = vsel %vm1341, %v1321, %v661
        %v1355 = vsel %vm1341, %v1322, %v663
        %v1356 = vsel %vm1341, %v1323, %v665
        %v1357 = vsel %vm1341, %v1324, %v667
        %v1358 = vsel %vm1341, %v1325, %v669
        %v1359 = vsel %vm1341, %v1326, %v671
        %v1360 = vsel %vm1341, %v1327, %v673
        %v1361 = vsel %vm1341, %v1328, %v675
        %v1362 = vsel %vm1341, %v1329, %v677
        %v1363 = vsel %vm1341, %v1330, %v679
        %v1364 = vsel %vm1341, %v1331, %v681
        %v1365 = vsel %vm1341, %v1332, %v683
        %v1366 = vsel %vm1341, %v1333, %v685
        %v1367 = vsel %vm1341, %v1334, %v687
        %v1368 = vsel %vm1341, %v1335, %v689
        %v1369 = vsel %vm1341, %v1336, %v691
        %v1370 = vsel %vm1341, %v1337, %v693
        %v1371 = vsel %vm1341, %v1338, %v695
        %v1372 = vsel %vm1341, %v1339, %v697
        %v1373 = vsel %vm1341, %v1340, %v699
        %vm1374 = vcmask 97280
        %v1375 = vsel %vm1374, %v1342, %v733
        %v1376 = vsel %vm1374, %v1343, %v735
        %v1377 = vsel %vm1374, %v1344, %v737
        %v1378 = vsel %vm1374, %v1345, %v739
        %v1379 = vsel %vm1374, %v1346, %v741
        %v1380 = vsel %vm1374, %v1347, %v743
        %v1381 = vsel %vm1374, %v1348, %v745
        %v1382 = vsel %vm1374, %v1349, %v747
        %v1383 = vsel %vm1374, %v1350, %v749
        %v1384 = vsel %vm1374, %v1351, %v751
        %v1385 = vsel %vm1374, %v1352, %v753
        %v1386 = vsel %vm1374, %v1353, %v755
        %v1387 = vsel %vm1374, %v1354, %v757
        %v1388 = vsel %vm1374, %v1355, %v759
        %v1389 = vsel %vm1374, %v1356, %v761
        %v1390 = vsel %vm1374, %v1357, %v763
        %v1391 = vsel %vm1374, %v1358, %v765
        %v1392 = vsel %vm1374, %v1359, %v767
        %v1393 = vsel %vm1374, %v1360, %v769
        %v1394 = vsel %vm1374, %v1361, %v771
        %v1395 = vsel %vm1374, %v1362, %v773
        %v1396 = vsel %vm1374, %v1363, %v775
        %v1397 = vsel %vm1374, %v1364, %v777
        %v1398 = vsel %vm1374, %v1365, %v779
        %v1399 = vsel %vm1374, %v1366, %v781
        %v1400 = vsel %vm1374, %v1367, %v783
        %v1401 = vsel %vm1374, %v1368, %v785
        %v1402 = vsel %vm1374, %v1369, %v787
        %v1403 = vsel %vm1374, %v1370, %v789
        %v1404 = vsel %vm1374, %v1371, %v791
        %v1405 = vsel %vm1374, %v1372, %v793
        %v1406 = vsel %vm1374, %v1373, %v795
        %vm1407 = vcmask 130048
        %v1408 = vsel %vm1407, %v1375, %v829
        %v1409 = vsel %vm1407, %v1376, %v831
        %v1410 = vsel %vm1407, %v1377, %v833
        %v1411 = vsel %vm1407, %v1378, %v835
        %v1412 = vsel %vm1407, %v1379, %v837
        %v1413 = vsel %vm1407, %v1380, %v839
        %v1414 = vsel %vm1407, %v1381, %v841
        %v1415 = vsel %vm1407, %v1382, %v843
        %v1416 = vsel %vm1407, %v1383, %v845
        %v1417 = vsel %vm1407, %v1384, %v847
        %v1418 = vsel %vm1407, %v1385, %v849
        %v1419 = vsel %vm1407, %v1386, %v851
        %v1420 = vsel %vm1407, %v1387, %v853
        %v1421 = vsel %vm1407, %v1388, %v855
        %v1422 = vsel %vm1407, %v1389, %v857
        %v1423 = vsel %vm1407, %v1390, %v859
        %v1424 = vsel %vm1407, %v1391, %v861
        %v1425 = vsel %vm1407, %v1392, %v863
        %v1426 = vsel %vm1407, %v1393, %v865
        %v1427 = vsel %vm1407, %v1394, %v867
        %v1428 = vsel %vm1407, %v1395, %v869
        %v1429 = vsel %vm1407, %v1396, %v871
        %v1430 = vsel %vm1407, %v1397, %v873
        %v1431 = vsel %vm1407, %v1398, %v875
        %v1432 = vsel %vm1407, %v1399, %v877
        %v1433 = vsel %vm1407, %v1400, %v879
        %v1434 = vsel %vm1407, %v1401, %v881
        %v1435 = vsel %vm1407, %v1402, %v883
        %v1436 = vsel %vm1407, %v1403, %v885
        %v1437 = vsel %vm1407, %v1404, %v887
        %v1438 = vsel %vm1407, %v1405, %v889
        %v1439 = vsel %vm1407, %v1406, %v891
        %vm1440 = vcmask 162816
        %v1441 = vsel %vm1440, %v1408, %v925
        %v1442 = vsel %vm1440, %v1409, %v927
        %v1443 = vsel %vm1440, %v1410, %v929
        %v1444 = vsel %vm1440, %v1411, %v931
        %v1445 = vsel %vm1440, %v1412, %v933
        %v1446 = vsel %vm1440, %v1413, %v935
        %v1447 = vsel %vm1440, %v1414, %v937
        %v1448 = vsel %vm1440, %v1415, %v939
        %v1449 = vsel %vm1440, %v1416, %v941
        %v1450 = vsel %vm1440, %v1417, %v943
        %v1451 = vsel %vm1440, %v1418, %v945
        %v1452 = vsel %vm1440, %v1419, %v947
        %v1453 = vsel %vm1440, %v1420, %v949
        %v1454 = vsel %vm1440, %v1421, %v951
        %v1455 = vsel %vm1440, %v1422, %v953
        %v1456 = vsel %vm1440, %v1423, %v955
        %v1457 = vsel %vm1440, %v1424, %v957
        %v1458 = vsel %vm1440, %v1425, %v959
        %v1459 = vsel %vm1440, %v1426, %v961
        %v1460 = vsel %vm1440, %v1427, %v963
        %v1461 = vsel %vm1440, %v1428, %v965
        %v1462 = vsel %vm1440, %v1429, %v967
        %v1463 = vsel %vm1440, %v1430, %v969
        %v1464 = vsel %vm1440, %v1431, %v971
        %v1465 = vsel %vm1440, %v1432, %v973
        %v1466 = vsel %vm1440, %v1433, %v975
        %v1467 = vsel %vm1440, %v1434, %v977
        %v1468 = vsel %vm1440, %v1435, %v979
        %v1469 = vsel %vm1440, %v1436, %v981
        %v1470 = vsel %vm1440, %v1437, %v983
        %v1471 = vsel %vm1440, %v1438, %v985
        %v1472 = vsel %vm1440, %v1439, %v987
        %vm1473 = vcmask 195584
        %v1474 = vsel %vm1473, %v1441, %v1021
        %v1475 = vsel %vm1473, %v1442, %v1023
        %v1476 = vsel %vm1473, %v1443, %v1025
        %v1477 = vsel %vm1473, %v1444, %v1027
        %v1478 = vsel %vm1473, %v1445, %v1029
        %v1479 = vsel %vm1473, %v1446, %v1031
        %v1480 = vsel %vm1473, %v1447, %v1033
        %v1481 = vsel %vm1473, %v1448, %v1035
        %v1482 = vsel %vm1473, %v1449, %v1037
        %v1483 = vsel %vm1473, %v1450, %v1039
        %v1484 = vsel %vm1473, %v1451, %v1041
        %v1485 = vsel %vm1473, %v1452, %v1043
        %v1486 = vsel %vm1473, %v1453, %v1045
        %v1487 = vsel %vm1473, %v1454, %v1047
        %v1488 = vsel %vm1473, %v1455, %v1049
        %v1489 = vsel %vm1473, %v1456, %v1051
        %v1490 = vsel %vm1473, %v1457, %v1053
        %v1491 = vsel %vm1473, %v1458, %v1055
        %v1492 = vsel %vm1473, %v1459, %v1057
        %v1493 = vsel %vm1473, %v1460, %v1059
        %v1494 = vsel %vm1473, %v1461, %v1061
        %v1495 = vsel %vm1473, %v1462, %v1063
        %v1496 = vsel %vm1473, %v1463, %v1065
        %v1497 = vsel %vm1473, %v1464, %v1067
        %v1498 = vsel %vm1473, %v1465, %v1069
        %v1499 = vsel %vm1473, %v1466, %v1071
        %v1500 = vsel %vm1473, %v1467, %v1073
        %v1501 = vsel %vm1473, %v1468, %v1075
        %v1502 = vsel %vm1473, %v1469, %v1077
        %v1503 = vsel %vm1473, %v1470, %v1079
        %v1504 = vsel %vm1473, %v1471, %v1081
        %v1505 = vsel %vm1473, %v1472, %v1083
        %vm1506 = vcmask 228352
        %v1507 = vsel %vm1506, %v1474, %v1117
        %v1508 = vsel %vm1506, %v1475, %v1119
        %v1509 = vsel %vm1506, %v1476, %v1121
        %v1510 = vsel %vm1506, %v1477, %v1123
        %v1511 = vsel %vm1506, %v1478, %v1125
        %v1512 = vsel %vm1506, %v1479, %v1127
        %v1513 = vsel %vm1506, %v1480, %v1129
        %v1514 = vsel %vm1506, %v1481, %v1131
        %v1515 = vsel %vm1506, %v1482, %v1133
        %v1516 = vsel %vm1506, %v1483, %v1135
        %v1517 = vsel %vm1506, %v1484, %v1137
        %v1518 = vsel %vm1506, %v1485, %v1139
        %v1519 = vsel %vm1506, %v1486, %v1141
        %v1520 = vsel %vm1506, %v1487, %v1143
        %v1521 = vsel %vm1506, %v1488, %v1145
        %v1522 = vsel %vm1506, %v1489, %v1147
        %v1523 = vsel %vm1506, %v1490, %v1149
        %v1524 = vsel %vm1506, %v1491, %v1151
        %v1525 = vsel %vm1506, %v1492, %v1153
        %v1526 = vsel %vm1506, %v1493, %v1155
        %v1527 = vsel %vm1506, %v1494, %v1157
        %v1528 = vsel %vm1506, %v1495, %v1159
        %v1529 = vsel %vm1506, %v1496, %v1161
        %v1530 = vsel %vm1506, %v1497, %v1163
        %v1531 = vsel %vm1506, %v1498, %v1165
        %v1532 = vsel %vm1506, %v1499, %v1167
        %v1533 = vsel %vm1506, %v1500, %v1169
        %v1534 = vsel %vm1506, %v1501, %v1171
        %v1535 = vsel %vm1506, %v1502, %v1173
        %v1536 = vsel %vm1506, %v1503, %v1175
        %v1537 = vsel %vm1506, %v1504, %v1177
        %v1538 = vsel %vm1506, %v1505, %v1179
        %vm1539 = vcmask 261120
        %v1540 = vsel %vm1539, %v1507, %v1213
        %v1541 = vsel %vm1539, %v1508, %v1215
        %v1542 = vsel %vm1539, %v1509, %v1217
        %v1543 = vsel %vm1539, %v1510, %v1219
        %v1544 = vsel %vm1539, %v1511, %v1221
        %v1545 = vsel %vm1539, %v1512, %v1223
        %v1546 = vsel %vm1539, %v1513, %v1225
        %v1547 = vsel %vm1539, %v1514, %v1227
        %v1548 = vsel %vm1539, %v1515, %v1229
        %v1549 = vsel %vm1539, %v1516, %v1231
        %v1550 = vsel %vm1539, %v1517, %v1233
        %v1551 = vsel %vm1539, %v1518, %v1235
        %v1552 = vsel %vm1539, %v1519, %v1237
        %v1553 = vsel %vm1539, %v1520, %v1239
        %v1554 = vsel %vm1539, %v1521, %v1241
        %v1555 = vsel %vm1539, %v1522, %v1243
        %v1556 = vsel %vm1539, %v1523, %v1245
        %v1557 = vsel %vm1539, %v1524, %v1247
        %v1558 = vsel %vm1539, %v1525, %v1249
        %v1559 = vsel %vm1539, %v1526, %v1251
        %v1560 = vsel %vm1539, %v1527, %v1253
        %v1561 = vsel %vm1539, %v1528, %v1255
        %v1562 = vsel %vm1539, %v1529, %v1257
        %v1563 = vsel %vm1539, %v1530, %v1259
        %v1564 = vsel %vm1539, %v1531, %v1261
        %v1565 = vsel %vm1539, %v1532, %v1263
        %v1566 = vsel %vm1539, %v1533, %v1265
        %v1567 = vsel %vm1539, %v1534, %v1267
        %v1568 = vsel %vm1539, %v1535, %v1269
        %v1569 = vsel %vm1539, %v1536, %v1271
        %v1570 = vsel %vm1539, %v1537, %v1273
        %v1571 = vsel %vm1539, %v1538, %v1275
        %v1572 = vpack.c.bf16 %v1541, %v1540
        %v1573 = vpack.c.bf16 %v1543, %v1542
        %v1574 = vpack.c.bf16 %v1545, %v1544
        %v1575 = vpack.c.bf16 %v1547, %v1546
        %v1576 = vpack.c.bf16 %v1549, %v1548
        %v1577 = vpack.c.bf16 %v1551, %v1550
        %v1578 = vpack.c.bf16 %v1553, %v1552
        %v1579 = vpack.c.bf16 %v1555, %v1554
        %v1580 = vpack.c.bf16 %v1557, %v1556
        %v1581 = vpack.c.bf16 %v1559, %v1558
        %v1582 = vpack.c.bf16 %v1561, %v1560
        %v1583 = vpack.c.bf16 %v1563, %v1562
        %v1584 = vpack.c.bf16 %v1565, %v1564
        %v1585 = vpack.c.bf16 %v1567, %v1566
        %v1586 = vpack.c.bf16 %v1569, %v1568
        %v1587 = vpack.c.bf16 %v1571, %v1570
        %v1588 = vld [vmem:[%s1] sm:$0xf]
        %v1589 = vld [vmem:[%s1 + $0x4] sm:$0xf]
        %v1590 = vld [vmem:[%s1 + $0x8] sm:$0xf]
        %v1591 = vld [vmem:[%s1 + $0xc] sm:$0xf]
        %v1592 = vld [vmem:[%s1 + $0x10] sm:$0x3]
        %v1598 = vunpack.c.l.b16 %v1588
        %v1599 = vunpack.c.l.b16 %v1589
        %v1600 = vunpack.c.l.b16 %v1590
        %v1601 = vunpack.c.l.b16 %v1591
        %v1602 = vunpack.c.l.b16 %v1592
        %v1603 = vpack.c.b16 %v1599, %v1598
        %v1604 = vpack.c.b16 %v1601, %v1600
        %v1605 = vpack.c.b16 %v1602, %v1602
        %vm1608 = vcmask 293888
        %v1610 = vsel %vm1608, %v1572, 0
        %v1613 = vsel %vm1608, %v1573, 0
        %v1616 = vsel %vm1608, %v1574, 0
        %v1619 = vsel %vm1608, %v1575, 0
        %v1622 = vsel %vm1608, %v1576, 0
        %v1625 = vsel %vm1608, %v1577, 0
        %v1628 = vsel %vm1608, %v1578, 0
        %v1631 = vsel %vm1608, %v1579, 0
        %v1634 = vsel %vm1608, %v1580, 0
        %v1637 = vsel %vm1608, %v1581, 0
        %v1640 = vsel %vm1608, %v1582, 0
        %v1643 = vsel %vm1608, %v1583, 0
        %v1646 = vsel %vm1608, %v1584, 0
        %v1649 = vsel %vm1608, %v1585, 0
        %v1652 = vsel %vm1608, %v1586, 0
        %v1655 = vsel %vm1608, %v1587, 0
        %vm1657 = vcmask 1041408
        %v1659 = vsel %vm1657, %v1605, 0
        %1661 = vmatpush.bf16.msra.mxu0 0
        %1662 = vmatpush.bf16.msra.mxu0 0
        %1663 = vmatpush.bf16.msra.mxu0 0
        %1664 = vmatpush.bf16.msra.mxu0 0
        %1665 = vmatpush.bf16.msra.mxu0 0
        %1666 = vmatpush.bf16.msra.mxu0 %v1659
        %1667 = vmatpush.bf16.msra.mxu0 %v1604
        %1668 = vmatpush.bf16.msra.mxu0 %v1603
        %1669 = vmatmul.bf16.gmra.mxu0 %v1610
        %v1670 = vpop.f32.mrf.mxu0
        %v1671 = vadd.f32 0.0, %v1670
        %v1672 = vpop.f32.mrf.mxu0
        %v1673 = vadd.f32 0.0, %v1672
        %1674 = vmatmul.bf16.gmra.mxu0 %v1613
        %v1675 = vpop.f32.mrf.mxu0
        %v1676 = vadd.f32 0.0, %v1675
        %v1677 = vpop.f32.mrf.mxu0
        %v1678 = vadd.f32 0.0, %v1677
        %1679 = vmatmul.bf16.gmra.mxu0 %v1616
        %v1680 = vpop.f32.mrf.mxu0
        %v1681 = vadd.f32 0.0, %v1680
        %v1682 = vpop.f32.mrf.mxu0
        %v1683 = vadd.f32 0.0, %v1682
        %1684 = vmatmul.bf16.gmra.mxu0 %v1619
        %v1685 = vpop.f32.mrf.mxu0
        %v1686 = vadd.f32 0.0, %v1685
        %v1687 = vpop.f32.mrf.mxu0
        %v1688 = vadd.f32 0.0, %v1687
        %1689 = vmatmul.bf16.gmra.mxu0 %v1622
        %v1690 = vpop.f32.mrf.mxu0
        %v1691 = vadd.f32 0.0, %v1690
        %v1692 = vpop.f32.mrf.mxu0
        %v1693 = vadd.f32 0.0, %v1692
        %1694 = vmatmul.bf16.gmra.mxu0 %v1625
        %v1695 = vpop.f32.mrf.mxu0
        %v1696 = vadd.f32 0.0, %v1695
        %v1697 = vpop.f32.mrf.mxu0
        %v1698 = vadd.f32 0.0, %v1697
        %1699 = vmatmul.bf16.gmra.mxu0 %v1628
        %v1700 = vpop.f32.mrf.mxu0
        %v1701 = vadd.f32 0.0, %v1700
        %v1702 = vpop.f32.mrf.mxu0
        %v1703 = vadd.f32 0.0, %v1702
        %1704 = vmatmul.bf16.gmra.mxu0 %v1631
        %v1705 = vpop.f32.mrf.mxu0
        %v1706 = vadd.f32 0.0, %v1705
        %v1707 = vpop.f32.mrf.mxu0
        %v1708 = vadd.f32 0.0, %v1707
        %1709 = vmatmul.bf16.gmra.mxu0 %v1634
        %v1710 = vpop.f32.mrf.mxu0
        %v1711 = vadd.f32 0.0, %v1710
        %v1712 = vpop.f32.mrf.mxu0
        %v1713 = vadd.f32 0.0, %v1712
        %1714 = vmatmul.bf16.gmra.mxu0 %v1637
        %v1715 = vpop.f32.mrf.mxu0
        %v1716 = vadd.f32 0.0, %v1715
        %v1717 = vpop.f32.mrf.mxu0
        %v1718 = vadd.f32 0.0, %v1717
        %1719 = vmatmul.bf16.gmra.mxu0 %v1640
        %v1720 = vpop.f32.mrf.mxu0
        %v1721 = vadd.f32 0.0, %v1720
        %v1722 = vpop.f32.mrf.mxu0
        %v1723 = vadd.f32 0.0, %v1722
        %1724 = vmatmul.bf16.gmra.mxu0 %v1643
        %v1725 = vpop.f32.mrf.mxu0
        %v1726 = vadd.f32 0.0, %v1725
        %v1727 = vpop.f32.mrf.mxu0
        %v1728 = vadd.f32 0.0, %v1727
        %1729 = vmatmul.bf16.gmra.mxu0 %v1646
        %v1730 = vpop.f32.mrf.mxu0
        %v1731 = vadd.f32 0.0, %v1730
        %v1732 = vpop.f32.mrf.mxu0
        %v1733 = vadd.f32 0.0, %v1732
        %1734 = vmatmul.bf16.gmra.mxu0 %v1649
        %v1735 = vpop.f32.mrf.mxu0
        %v1736 = vadd.f32 0.0, %v1735
        %v1737 = vpop.f32.mrf.mxu0
        %v1738 = vadd.f32 0.0, %v1737
        %1739 = vmatmul.bf16.gmra.mxu0 %v1652
        %v1740 = vpop.f32.mrf.mxu0
        %v1741 = vadd.f32 0.0, %v1740
        %v1742 = vpop.f32.mrf.mxu0
        %v1743 = vadd.f32 0.0, %v1742
        %1744 = vmatmul.bf16.gmra.mxu0 %v1655
        %v1745 = vpop.f32.mrf.mxu0
        %v1746 = vadd.f32 0.0, %v1745
        %v1747 = vpop.f32.mrf.mxu0
        %v1748 = vadd.f32 0.0, %v1747
        %1749 = vdwg.mxu0
        %v1750 = vadd.f32 %v1671, %v1673
        %v1751 = vadd.f32 %v1750, %v1676
        %v1752 = vadd.f32 %v1751, %v1678
        %v1753 = vadd.f32 %v1752, %v1681
        %v1754 = vadd.f32 %v1753, %v1683
        %v1755 = vadd.f32 %v1754, %v1686
        %v1756 = vadd.f32 %v1755, %v1688
        %v1757 = vadd.f32 %v1756, %v1691
        %v1758 = vadd.f32 %v1757, %v1693
        %v1759 = vadd.f32 %v1758, %v1696
        %v1760 = vadd.f32 %v1759, %v1698
        %v1761 = vadd.f32 %v1760, %v1701
        %v1762 = vadd.f32 %v1761, %v1703
        %v1763 = vadd.f32 %v1762, %v1706
        %v1764 = vadd.f32 %v1763, %v1708
        %v1765 = vadd.f32 %v1764, %v1711
        %v1766 = vadd.f32 %v1765, %v1713
        %v1767 = vadd.f32 %v1766, %v1716
        %v1768 = vadd.f32 %v1767, %v1718
        %v1769 = vadd.f32 %v1768, %v1721
        %v1770 = vadd.f32 %v1769, %v1723
        %v1771 = vadd.f32 %v1770, %v1726
        %v1772 = vadd.f32 %v1771, %v1728
        %v1773 = vadd.f32 %v1772, %v1731
        %v1774 = vadd.f32 %v1773, %v1733
        %v1775 = vadd.f32 %v1774, %v1736
        %v1776 = vadd.f32 %v1775, %v1738
        %v1777 = vadd.f32 %v1776, %v1741
        %v1778 = vadd.f32 %v1777, %v1743
        %v1779 = vadd.f32 %v1778, %v1746
        %v1780 = vadd.f32 %v1779, %v1748
        %v1781 = vrot.slane %v1780, 4
        %v1782 = vadd.f32 %v1780, %v1781
        %v1783 = vrot.slane %v1782, 2
        %v1784 = vadd.f32 %v1782, %v1783
        %v1785 = vrot.slane %v1784, 1
        %v1786 = vadd.f32 %v1784, %v1785
        %v1787 = vpack.c.bf16 %v1786, %v1786
        %v1788 = vld [vmem:[%s2] sm:$0xf]
        %v1789 = vld [vmem:[%s2 + $0x4] sm:$0xf]
        %v1790 = vld [vmem:[%s2 + $0x8] sm:$0xf]
        %v1791 = vld [vmem:[%s2 + $0xc] sm:$0xf]
        %v1792 = vld [vmem:[%s2 + $0x10] sm:$0xf]
        %v1793 = vld [vmem:[%s2 + $0x14] sm:$0xf]
        %v1794 = vld [vmem:[%s2 + $0x18] sm:$0xf]
        %v1795 = vld [vmem:[%s2 + $0x1c] sm:$0xf]
        %v1796 = vld [vmem:[%s2 + $0x20] sm:$0xf]
        %v1797 = vld [vmem:[%s2 + $0x24] sm:$0xf]
        %v1798 = vld [vmem:[%s2 + $0x28] sm:$0xf]
        %v1799 = vld [vmem:[%s2 + $0x2c] sm:$0xf]
        %v1800 = vld [vmem:[%s2 + $0x30] sm:$0xf]
        %v1801 = vld [vmem:[%s2 + $0x34] sm:$0xf]
        %v1802 = vld [vmem:[%s2 + $0x38] sm:$0xf]
        %v1803 = vld [vmem:[%s2 + $0x3c] sm:$0xf]
        %v1804 = vld [vmem:[%s3] sm:$0x1]
        %v1821 = vunpack.c.l.b16 %v1788
        %v1822 = vunpack.c.l.b16 %v1789
        %v1823 = vunpack.c.l.b16 %v1790
        %v1824 = vunpack.c.l.b16 %v1791
        %v1825 = vunpack.c.l.b16 %v1792
        %v1826 = vunpack.c.l.b16 %v1793
        %v1827 = vunpack.c.l.b16 %v1794
        %v1828 = vunpack.c.l.b16 %v1795
        %v1829 = vunpack.c.l.b16 %v1796
        %v1830 = vunpack.c.l.b16 %v1797
        %v1831 = vunpack.c.l.b16 %v1798
        %v1832 = vunpack.c.l.b16 %v1799
        %v1833 = vunpack.c.l.b16 %v1800
        %v1834 = vunpack.c.l.b16 %v1801
        %v1835 = vunpack.c.l.b16 %v1802
        %v1836 = vunpack.c.l.b16 %v1803
        %v1837 = vpack.c.b16 %v1822, %v1821
        %v1838 = vpack.c.b16 %v1824, %v1823
        %v1839 = vpack.c.b16 %v1826, %v1825
        %v1840 = vpack.c.b16 %v1828, %v1827
        %v1841 = vpack.c.b16 %v1830, %v1829
        %v1842 = vpack.c.b16 %v1832, %v1831
        %v1843 = vpack.c.b16 %v1834, %v1833
        %v1844 = vpack.c.b16 %v1836, %v1835
        %1853 = vmatpush.bf16.msra.mxu0 %v1844
        %1854 = vmatpush.bf16.msra.mxu0 %v1843
        %1855 = vmatpush.bf16.msra.mxu0 %v1842
        %1856 = vmatpush.bf16.msra.mxu0 %v1841
        %1857 = vmatpush.bf16.msra.mxu0 %v1840
        %1858 = vmatpush.bf16.msra.mxu0 %v1839
        %1859 = vmatpush.bf16.msra.mxu0 %v1838
        %1860 = vmatpush.bf16.msra.mxu0 %v1837
        %1861 = vmatmul.bf16.gmra.mxu0 %v1787
        %v1862 = vpop.f32.mrf.mxu0
        %v1863 = vadd.f32 %v1804, %v1862
        %v1864 = vpop.f32.mrf.mxu0
        %1865 = vdwg.mxu0
        %1866 = vst [vmem:[%s189] sm:$0x1] %v1863
        %s1867 = sand.u32 %s115, 1
        %s1868 = scalar_lea.sflag [#allocation3], %s1867
        %s1869 = sand.u32 %s115, 1
        %s1870 = scalar_lea.vmem [#allocation2], %s1869
        // Predicated region
        $region37: #{tpu_custom_call.1} parent=35 // pred_check
          %p1871 = pneg %p125
        $region38: #{tpu_custom_call.1} parent=35 // pred_check_branch
          %1873 = sbr.rel (%p1871) target = $region40
        $region39: #{tpu_custom_call.1} parent=35 // pred_region
          %1875 = vsyncadd %s1868, 0
          %s1876 = scalar_lea.hbm %s4, %s18
          %s1878 = sshll.u32 %s1870, 4
          %s1879 = int_to_ptr.vmem [resolvable:$true] %s1878
          %s1880 = sshll.u32 %s1876, 4
          %s1881 = int_to_ptr.hbm [resolvable:$true] %s1880
          %1883 = dma.vmem_to_hbm [thread:$0]  %s1879, 16, %s1881, %s1868
        $region40: #{tpu_custom_call.1} parent=35 // pred_fallthru
          _
      $region36: #{tpu_custom_call.1} parent=5 // pred_fallthru
        _
      %p1884 = scmp.le.s32.totalorder 2, %s13
      // Predicated region
      $region41: #{tpu_custom_call.1} parent=5 // pred_check
        %p1885 = pneg %p1884
      $region42: #{tpu_custom_call.1} parent=5 // pred_check_branch
        %1887 = sbr.rel (%p1885) target = $region44
      $region43: #{tpu_custom_call.1} parent=5 // pred_region
        %s1888 = ssub.s32 %s13, 2
        // Predicated region
        $region45: #{tpu_custom_call.1} parent=43 // pred_check
          %p1889 = pneg %p131
        $region46: #{tpu_custom_call.1} parent=43 // pred_check_branch
          %1891 = sbr.rel (%p1889) target = $region48
        $region47: #{tpu_custom_call.1} parent=43 // pred_region
          %s1892 = sand.u32 %s116, 1
          %s1893 = scalar_lea.sflag [#allocation3], %s1892
          %s1894 = sand.u32 %s116, 1
          %s1895 = scalar_lea.vmem [#allocation2], %s1894
          %1897 = dma.done %s1893, 16
        $region48: #{tpu_custom_call.1} parent=43 // pred_fallthru
          _
      $region44: #{tpu_custom_call.1} parent=5 // pred_fallthru
        _
    $region6: #{tpu_custom_call.1} parent=1 // loop_footer
      %s17 = sadd.s32 1, %s13
    $region7: #{tpu_custom_call.1} parent=1 // loop_footer_branch
      %12 = sbr.rel target = $region3
    $region8: #{tpu_custom_call.1} parent=1 // loop_exit
      _
    %1898 = vsyncpa [#allocation3], 1
    %s1899 = scalar_lea.sflag [#allocation3], 1
    %1900 = vsyncpa %s1899, 1

</llo_original>
